<compile_context>
chip_gen: v6e
topology: v6e:2x2x1
jax: 0.10.0
libtpu: 0.0.40
codegen_flags: <defaults>
</compile_context>

<pallas_src>
import math

import jax
import jax.numpy as jnp
from jax.experimental import pallas as pl
from jax.experimental.pallas import tpu as pltpu

C = 100          # hidden channel count of every Conv2d / ConvTranspose2d
NEG_SLOPE = 0.01 # nn.LeakyReLU default
BN_EPS = 1e-5    # nn.BatchNorm2d default


# ---------------------------------------------------------------- kernel ----
def _make_kernel(layers, compute_dtype, unroll_limit=8):
    def layer_step(past, ah, av, bh, bv):
        p = past.astype(compute_dtype)
        # horizontal conv+tconv fused: past @ kron(I_Bn, Ah[l])
        hv = jnp.dot(p, ah, preferred_element_type=jnp.float32)
        # vertical conv+tconv fused: Av[l] @ past
        vh = jnp.dot(av, p, preferred_element_type=jnp.float32)
        past = hv + vh + bh + bv + past                 # fused biases + residual
        return jnp.maximum(past, NEG_SLOPE * past)      # LeakyReLU (mul+max)

    def kernel(bn_ref, x_ref, ah_ref, av_ref, bh_ref, bv_ref, o_ref):
        # BatchNorm affine fused here (statistics computed in the wrapper).
        mean, scale, beta = bn_ref[0], bn_ref[1], bn_ref[2]
        past = (x_ref[...] - mean) * scale + beta       # (H, Bn*W) f32
        if layers <= unroll_limit:
            for l in range(layers):                     # small L: static unroll
                past = layer_step(past, ah_ref[l], av_ref[l],
                                  bh_ref[l], bv_ref[l])
        else:
            # large L: bounded live ranges / compile time via fori_loop
            def body(l, p):
                return layer_step(p, ah_ref[l], av_ref[l], bh_ref[l], bv_ref[l])
            past = jax.lax.fori_loop(0, layers, body, past, unroll=2)
        o_ref[...] = past
    return kernel


# ------------------------------------------------------------- heuristics ---
def _ceil_to(n, m):
    return -(-n // m) * m


def _num_tensorcores():
    """Best-effort TensorCores-per-device (perf heuristic only)."""
    try:
        kind = jax.devices()[0].device_kind.lower()
    except Exception:
        return 2
    if "lite" in kind or "v5e" in kind or "v6" in kind:
        return 1          # v5e / v6e: single TensorCore
    return 2              # v4/v5p megacore, v7x dual-TC, unknown -> assume 2


def _vmem_capacity_bytes():
    try:
        return int(pltpu.get_tpu_info().vmem_capacity_bytes)
    except Exception:
        return 64 * 1024 * 1024   # v7x per-TC (smallest recent part)


def _pick_bn(N, W, num_cores):
    """Pick the per-grid-step batch fold Bn and the padded batch size.

    Bn*W is always a multiple of 128 (lane-dense blocks, unmasked stores).
    Single-TC chips collapse to as few grid steps as possible (steps are pure
    serial overhead); dual-TC chips keep >= 2 'parallel' steps and cap the
    lane width so the kron(I_Bn, Ah) operator footprint stays bounded."""
    bn0 = max(1, 128 // math.gcd(128, W))            # lane-density granule
    max_lanes = 512 if num_cores <= 1 else 256       # kron / VMEM footprint cap
    # TODO(synk): for W >= 128 reformulate the horizontal step as a
    # (Bn*H, W) @ (W, W) matmul instead of the block-diagonal kron (which
    # streams zeros and inflates MXU work by Bn x).
    if W >= max_lanes:
        max_bn = bn0
    else:
        max_bn = max(bn0, ((max_lanes // W) // bn0) * bn0)
    if num_cores <= 1:
        bn = min(max_bn, _ceil_to(N, bn0))           # one big slab if possible
    else:
        bn = max_bn
        while bn > bn0 and -(-N // bn) < 2:          # keep >= 2 parallel steps
            bn -= bn0
    return bn, _ceil_to(N, bn)


# ------------------------------------------------------------ fused params --
def _prepare_fused(params, L, H, W, Bn, compute_dtype):
    """Fold each conv->tconv pair into one matrix + factored bias per layer.

      hv = past @ (whT @ Th) + (bh @ Th + tbh)   -> Ah (W,W),  row bias (1,W)
      vh = (tvT @ Wv) @ past + (tvT @ bv + tbv)  -> Av (H,H),  col bias (H,1)

    Ah is block-diagonalized for the batch-folded lane layout; biases stay
    factored and are broadcast-added inside the kernel."""
    hi = jax.lax.Precision.HIGHEST
    Ah = jnp.einsum("lwc,lcv->lwv", params["whT"], params["th"], precision=hi)
    bh = jnp.einsum("lxc,lcv->lxv", params["bh"], params["th"], precision=hi)
    bh = bh + params["tbh"][:, None, None]                        # (L, 1, W)
    Av = jnp.einsum("lhc,lck->lhk", params["tvT"], params["wv"], precision=hi)
    bv = jnp.einsum("lhc,lcx->lhx", params["tvT"], params["bv"], precision=hi)
    bv = bv + params["tbv"][:, None, None]                        # (L, H, 1)

    eye = jnp.eye(Bn, dtype=Ah.dtype)
    ah_bd = jnp.einsum("ab,lwv->lawbv", eye, Ah).reshape(L, Bn * W, Bn * W)
    bh_row = jnp.tile(bh, (1, 1, Bn))                              # (L, 1, Bn*W)
    return (ah_bd.astype(compute_dtype), Av.astype(compute_dtype),
            bh_row.astype(jnp.float32), bv.astype(jnp.float32))


# ---------------------------------------------------------------- wrapper ---
def generative_forward(x, params, layers, block_n=None, buffered_consts=True,
                       compute_dtype=jnp.float32):
    """x: (N, 1, H, W) float32 (PyTorch NCHW). Returns (N, 1, H, W) float32."""
    N, _, H, W = x.shape
    L = layers
    x3 = x.reshape(N, H, W).astype(jnp.float32)

    # BatchNorm2d(1) training-mode statistics (biased variance, like the
    # PyTorch forward); affine applied inside the kernel from SMEM scalars.
    mean = jnp.mean(x3)
    var = jnp.mean((x3 - mean) ** 2)
    scale = params["bn_gamma"] / jnp.sqrt(var + BN_EPS)
    bn = jnp.stack([mean, scale, params["bn_beta"]]).astype(jnp.float32)

    cores = _num_tensorcores()
    if block_n is None:
        Bn, N_pad = _pick_bn(N, W, cores)
    else:
        Bn, N_pad = block_n, _ceil_to(N, block_n)
    BnW = Bn * W

    ah_bd, av, bh_row, bv_col = _prepare_fused(params, L, H, W, Bn, compute_dtype)

    # Lane-dense layout: batch folded into the lane axis -> (H, N_pad*W).
    if N_pad != N:   # zero-pad batch so every block stays a 128-lane multiple
        x3 = jnp.concatenate([x3, jnp.zeros((N_pad - N, H, W), x3.dtype)], 0)
    xt = jnp.transpose(x3, (1, 0, 2)).reshape(H, N_pad * W)

    def _const_spec(shape):
        # Constant operands: same block every step -> single-buffer them to
        # halve their VMEM residency (the re-fetch is already skipped).
        if buffered_consts:
            return pl.BlockSpec(shape, lambda i: (0, 0, 0),
                                pipeline_mode=pl.Buffered(1))
        return pl.BlockSpec(shape, lambda i: (0, 0, 0))

    grid_spec = pltpu.PrefetchScalarGridSpec(
        num_scalar_prefetch=0,
        grid=(N_pad // Bn,),
        in_specs=[
            pl.BlockSpec(memory_space=pltpu.MemorySpace.SMEM),   # bn scalars (3,)
            pl.BlockSpec((H, BnW), lambda i: (0, i)),            # x, batch-folded
            _const_spec((L, BnW, BnW)),                          # kron(I_Bn, Ah)
            _const_spec((L, H, H)),                              # Av
            _const_spec((L, 1, BnW)),                            # fused row bias
            _const_spec((L, H, 1)),                              # fused col bias
        ],
        out_specs=pl.BlockSpec((H, BnW), lambda i: (0, i)),
    )

    # Scoped-VMEM sizing: only override the default limit when the footprint
    # demands it, and never ask for more than ~3/4 of physical VMEM per core.
    csz = jnp.dtype(compute_dtype).itemsize
    const_bytes = L * (BnW * BnW + H * H) * csz + L * (BnW + H) * 4
    io_bytes = 2 * 2 * (H * BnW * 4)            # x + out blocks, double-buffered
    act_bytes = 6 * H * BnW * 4                 # activation temporaries
    vmem_need = const_bytes * (1 if buffered_consts else 2) + io_bytes + act_bytes
    cp_kwargs = {"dimension_semantics": ("parallel",)}
    if vmem_need > 12 * 1024 * 1024:
        cp_kwargs["vmem_limit_bytes"] = int(
            min(2 * vmem_need, (3 * _vmem_capacity_bytes()) // 4))
    # Note (v7x): with a "parallel" grid each TC fetches its own copy of the
    # ~O(100 KiB) constants; fine at this size (revisit if operators grow).

    out_t = pl.pallas_call(
        _make_kernel(L, compute_dtype),
        out_shape=jax.ShapeDtypeStruct((H, N_pad * W), jnp.float32),
        grid_spec=grid_spec,
        compiler_params=pltpu.CompilerParams(**cp_kwargs),
    )(bn, xt, ah_bd, av, bh_row, bv_col)

    out = jnp.transpose(out_t.reshape(H, N_pad, W), (1, 0, 2))[:N]
    return out.reshape(N, 1, H, W)


# -------------------------------------------------------------- reference ---
def reference_forward(x, params, layers):
    """Pure-JAX f32 reference of the original (unfused) module math."""
    hi = jax.lax.Precision.HIGHEST
    N, _, H, W = x.shape
    mean = jnp.mean(x)
    var = jnp.mean((x - mean) ** 2)
    past = ((x - mean) * (params["bn_gamma"] / jnp.sqrt(var + BN_EPS))
            + params["bn_beta"]).reshape(N, H, W)
    for l in range(layers):
        h1 = jnp.einsum("nhw,wc->nhc", past, params["whT"][l], precision=hi) + params["bh"][l]
        hv = jnp.einsum("nhc,cw->nhw", h1, params["th"][l], precision=hi) + params["tbh"][l]
        v1 = jnp.einsum("ch,nhw->ncw", params["wv"][l], past, precision=hi) + params["bv"][l]
        vh = jnp.einsum("hc,ncw->nhw", params["tvT"][l], v1, precision=hi) + params["tbv"][l]
        past = hv + vh + past
        past = jnp.where(past >= 0, past, NEG_SLOPE * past)
    return past.reshape(N, 1, H, W)


def init_params(key, H, W, L, scale=0.05):
    ks = jax.random.split(key, 9)
    rnd = lambda k, shp: (scale * jax.random.normal(k, shp)).astype(jnp.float32)
    # PyTorch weight shapes:
    #   horizontal Conv2d(1,C,(1,W)):          (C,1,1,W) -> Wh (C,W) -> whT (W,C)
    #   horizontal ConvTranspose2d(C,1,(1,W)):  (C,1,1,W) -> Th (C,W)
    #   vertical   Conv2d(1,C,(H,1)):           (C,1,H,1) -> Wv (C,H)
    #   vertical   ConvTranspose2d(C,1,(H,1)):  (C,1,H,1) -> Tv (C,H) -> tvT (H,C)
    wh = rnd(ks[0], (L, C, W))
    th = rnd(ks[1], (L, C, W))
    wv = rnd(ks[2], (L, C, H))
    tv = rnd(ks[3], (L, C, H))
    return {
        "whT": jnp.transpose(wh, (0, 2, 1)),                 # (L, W, C)
        "bh": rnd(ks[4], (L, 1, C)),                         # horiz conv bias
        "th": th,                                            # (L, C, W)
        "tbh": rnd(ks[5], (L,)),                             # horiz tconv bias
        "wv": wv,                                            # (L, C, H)
        "bv": rnd(ks[6], (L, C, 1)),                         # vert conv bias
        "tvT": jnp.transpose(tv, (0, 2, 1)),                 # (L, H, C)
        "tbv": rnd(ks[7], (L,)),                             # vert tconv bias
        "bn_gamma": jnp.float32(1.0),                        # BatchNorm2d(1) affine
        "bn_beta": jnp.float32(0.0),
    }


if __name__ == "__main__":
    # Bn=16 (single-TC) or 8 (dual-TC) -> 256/128-lane dense blocks.
    N, H, W, LAYERS = 16, 16, 16, 3
    key = jax.random.PRNGKey(0)
    kx, kp = jax.random.split(key)
    x = jax.random.normal(kx, (N, 1, H, W), dtype=jnp.float32)
    params = init_params(kp, H, W, LAYERS)

    fwd = jax.jit(generative_forward,
                  static_argnames=("layers", "block_n", "buffered_consts",
                                   "compute_dtype"))
    try:
        out = fwd(x, params, layers=LAYERS)
        jax.block_until_ready(out)
    except Exception:
        # Fallback: identical math without the Buffered(1) hint on constants
        # (older jax may not accept pipeline_mode on BlockSpec).
        out = fwd(x, params, layers=LAYERS, buffered_consts=False)
        jax.block_until_ready(out)

    ref = reference_forward(x, params, LAYERS)
    assert out.shape == (N, 1, H, W)
    # f32 operators + exact algebraic conv->tconv fusion: expected drift vs
    # the unfused f32 reference is <1e-3; 1e-2 leaves margin for the MXU's
    # f32 pass decomposition.
    assert jnp.allclose(out, ref, atol=1e-2, rtol=1e-2), "mismatch vs reference"
    print("KERNEL_OK")
</pallas_src>

<mosaic_0001>
module attributes {stable_mosaic.version = 11 : i64} {
  func.func @kernel(%arg0: i32, %arg1: memref<3xf32, #tpu.memory_space<smem>>, %arg2: memref<16x128xf32, #tpu.memory_space<vmem>>, %arg3: memref<3x128x128xf32, #tpu.memory_space<vmem>>, %arg4: memref<3x16x16xf32, #tpu.memory_space<vmem>>, %arg5: memref<3x1x128xf32, #tpu.memory_space<vmem>>, %arg6: memref<3x16x1xf32, #tpu.memory_space<vmem>>, %arg7: memref<16x128xf32, #tpu.memory_space<vmem>>) attributes {dimension_semantics = [#tpu.dimension_semantics<parallel>], iteration_bounds = array<i64: 2>, scalar_prefetch = 0 : i64, scratch_operands = 0 : i64, tpu.core_type = #tpu.core_type<tc>, window_params = [{transform_indices = @transform_0, window_bounds = array<i64: 3>}, {transform_indices = @transform_1, window_bounds = array<i64: 16, 128>}, {pipeline_mode = #tpu.pipeline_mode<synchronous>, transform_indices = @transform_2, window_bounds = array<i64: 3, 128, 128>}, {pipeline_mode = #tpu.pipeline_mode<synchronous>, transform_indices = @transform_3, window_bounds = array<i64: 3, 16, 16>}, {pipeline_mode = #tpu.pipeline_mode<synchronous>, transform_indices = @transform_4, window_bounds = array<i64: 3, 1, 128>}, {pipeline_mode = #tpu.pipeline_mode<synchronous>, transform_indices = @transform_5, window_bounds = array<i64: 3, 16, 1>}, {transform_indices = @transform_6, window_bounds = array<i64: 16, 128>}]} {
    %c0 = arith.constant 0 : index
    %0 = memref.load %arg1[%c0] : memref<3xf32, #tpu.memory_space<smem>>
    %c1 = arith.constant 1 : index
    %1 = memref.load %arg1[%c1] : memref<3xf32, #tpu.memory_space<smem>>
    %c2 = arith.constant 2 : index
    %2 = memref.load %arg1[%c2] : memref<3xf32, #tpu.memory_space<smem>>
    %c0_0 = arith.constant 0 : index
    %c0_1 = arith.constant 0 : index
    %3 = vector.load %arg2[%c0_0, %c0_1] : memref<16x128xf32, #tpu.memory_space<vmem>>, vector<16x128xf32>
    %4 = vector.broadcast %0 : f32 to vector<16x128xf32>
    %5 = arith.subf %3, %4 : vector<16x128xf32>
    %6 = vector.broadcast %1 : f32 to vector<16x128xf32>
    %7 = arith.mulf %5, %6 : vector<16x128xf32>
    %8 = vector.broadcast %2 : f32 to vector<16x128xf32>
    %9 = arith.addf %7, %8 : vector<16x128xf32>
    %c0_2 = arith.constant 0 : index
    %c0_3 = arith.constant 0 : index
    %c0_4 = arith.constant 0 : index
    %10 = vector.load %arg3[%c0_2, %c0_3, %c0_4] : memref<3x128x128xf32, #tpu.memory_space<vmem>>, vector<1x128x128xf32>
    %11 = vector.shape_cast %10 : vector<1x128x128xf32> to vector<128x128xf32>
    %c0_5 = arith.constant 0 : index
    %c0_6 = arith.constant 0 : index
    %c0_7 = arith.constant 0 : index
    %12 = vector.load %arg4[%c0_5, %c0_6, %c0_7] : memref<3x16x16xf32, #tpu.memory_space<vmem>>, vector<1x16x16xf32>
    %13 = vector.shape_cast %12 : vector<1x16x16xf32> to vector<16x16xf32>
    %c0_8 = arith.constant 0 : index
    %c0_9 = arith.constant 0 : index
    %c0_10 = arith.constant 0 : index
    %14 = vector.load %arg5[%c0_8, %c0_9, %c0_10] : memref<3x1x128xf32, #tpu.memory_space<vmem>>, vector<1x1x128xf32>
    %15 = vector.shape_cast %14 : vector<1x1x128xf32> to vector<1x128xf32>
    %c0_11 = arith.constant 0 : index
    %c0_12 = arith.constant 0 : index
    %c0_13 = arith.constant 0 : index
    %16 = vector.load %arg6[%c0_11, %c0_12, %c0_13] : memref<3x16x1xf32, #tpu.memory_space<vmem>>, vector<1x16x1xf32>
    %17 = vector.shape_cast %16 : vector<1x16x1xf32> to vector<16x1xf32>
    %cst = arith.constant dense<0.000000e+00> : vector<16x128xf32>
    %18 = tpu.matmul %9, %11, %cst {dimension_numbers = #tpu.dot_dimension_numbers<[1], [0], [0], [1], [0, 0, 1, 1], [], []>} : vector<16x128xf32>, vector<128x128xf32>, vector<16x128xf32> -> vector<16x128xf32>
    %cst_14 = arith.constant dense<0.000000e+00> : vector<16x128xf32>
    %19 = tpu.matmul %13, %9, %cst_14 {dimension_numbers = #tpu.dot_dimension_numbers<[1], [0], [0], [1], [0, 0, 1, 1], [], []>} : vector<16x16xf32>, vector<16x128xf32>, vector<16x128xf32> -> vector<16x128xf32>
    %20 = arith.addf %18, %19 : vector<16x128xf32>
    %21 = vector.broadcast %15 : vector<1x128xf32> to vector<16x128xf32>
    %22 = arith.addf %20, %21 : vector<16x128xf32>
    %23 = vector.broadcast %17 : vector<16x1xf32> to vector<16x128xf32>
    %24 = arith.addf %22, %23 : vector<16x128xf32>
    %25 = arith.addf %24, %9 : vector<16x128xf32>
    %cst_15 = arith.constant 0.00999999977 : f32
    %26 = vector.broadcast %cst_15 : f32 to vector<16x128xf32>
    %27 = arith.mulf %26, %25 : vector<16x128xf32>
    %28 = arith.maximumf %25, %27 : vector<16x128xf32>
    %c1_16 = arith.constant 1 : index
    %c0_17 = arith.constant 0 : index
    %c0_18 = arith.constant 0 : index
    %29 = vector.load %arg3[%c1_16, %c0_17, %c0_18] : memref<3x128x128xf32, #tpu.memory_space<vmem>>, vector<1x128x128xf32>
    %30 = vector.shape_cast %29 : vector<1x128x128xf32> to vector<128x128xf32>
    %c1_19 = arith.constant 1 : index
    %c0_20 = arith.constant 0 : index
    %c0_21 = arith.constant 0 : index
    %31 = vector.load %arg4[%c1_19, %c0_20, %c0_21] : memref<3x16x16xf32, #tpu.memory_space<vmem>>, vector<1x16x16xf32>
    %32 = vector.shape_cast %31 : vector<1x16x16xf32> to vector<16x16xf32>
    %c1_22 = arith.constant 1 : index
    %c0_23 = arith.constant 0 : index
    %c0_24 = arith.constant 0 : index
    %33 = vector.load %arg5[%c1_22, %c0_23, %c0_24] : memref<3x1x128xf32, #tpu.memory_space<vmem>>, vector<1x1x128xf32>
    %34 = vector.shape_cast %33 : vector<1x1x128xf32> to vector<1x128xf32>
    %c1_25 = arith.constant 1 : index
    %c0_26 = arith.constant 0 : index
    %c0_27 = arith.constant 0 : index
    %35 = vector.load %arg6[%c1_25, %c0_26, %c0_27] : memref<3x16x1xf32, #tpu.memory_space<vmem>>, vector<1x16x1xf32>
    %36 = vector.shape_cast %35 : vector<1x16x1xf32> to vector<16x1xf32>
    %cst_28 = arith.constant dense<0.000000e+00> : vector<16x128xf32>
    %37 = tpu.matmul %28, %30, %cst_28 {dimension_numbers = #tpu.dot_dimension_numbers<[1], [0], [0], [1], [0, 0, 1, 1], [], []>} : vector<16x128xf32>, vector<128x128xf32>, vector<16x128xf32> -> vector<16x128xf32>
    %cst_29 = arith.constant dense<0.000000e+00> : vector<16x128xf32>
    %38 = tpu.matmul %32, %28, %cst_29 {dimension_numbers = #tpu.dot_dimension_numbers<[1], [0], [0], [1], [0, 0, 1, 1], [], []>} : vector<16x16xf32>, vector<16x128xf32>, vector<16x128xf32> -> vector<16x128xf32>
    %39 = arith.addf %37, %38 : vector<16x128xf32>
    %40 = vector.broadcast %34 : vector<1x128xf32> to vector<16x128xf32>
    %41 = arith.addf %39, %40 : vector<16x128xf32>
    %42 = vector.broadcast %36 : vector<16x1xf32> to vector<16x128xf32>
    %43 = arith.addf %41, %42 : vector<16x128xf32>
    %44 = arith.addf %43, %28 : vector<16x128xf32>
    %cst_30 = arith.constant 0.00999999977 : f32
    %45 = vector.broadcast %cst_30 : f32 to vector<16x128xf32>
    %46 = arith.mulf %45, %44 : vector<16x128xf32>
    %47 = arith.maximumf %44, %46 : vector<16x128xf32>
    %c2_31 = arith.constant 2 : index
    %c0_32 = arith.constant 0 : index
    %c0_33 = arith.constant 0 : index
    %48 = vector.load %arg3[%c2_31, %c0_32, %c0_33] : memref<3x128x128xf32, #tpu.memory_space<vmem>>, vector<1x128x128xf32>
    %49 = vector.shape_cast %48 : vector<1x128x128xf32> to vector<128x128xf32>
    %c2_34 = arith.constant 2 : index
    %c0_35 = arith.constant 0 : index
    %c0_36 = arith.constant 0 : index
    %50 = vector.load %arg4[%c2_34, %c0_35, %c0_36] : memref<3x16x16xf32, #tpu.memory_space<vmem>>, vector<1x16x16xf32>
    %51 = vector.shape_cast %50 : vector<1x16x16xf32> to vector<16x16xf32>
    %c2_37 = arith.constant 2 : index
    %c0_38 = arith.constant 0 : index
    %c0_39 = arith.constant 0 : index
    %52 = vector.load %arg5[%c2_37, %c0_38, %c0_39] : memref<3x1x128xf32, #tpu.memory_space<vmem>>, vector<1x1x128xf32>
    %53 = vector.shape_cast %52 : vector<1x1x128xf32> to vector<1x128xf32>
    %c2_40 = arith.constant 2 : index
    %c0_41 = arith.constant 0 : index
    %c0_42 = arith.constant 0 : index
    %54 = vector.load %arg6[%c2_40, %c0_41, %c0_42] : memref<3x16x1xf32, #tpu.memory_space<vmem>>, vector<1x16x1xf32>
    %55 = vector.shape_cast %54 : vector<1x16x1xf32> to vector<16x1xf32>
    %cst_43 = arith.constant dense<0.000000e+00> : vector<16x128xf32>
    %56 = tpu.matmul %47, %49, %cst_43 {dimension_numbers = #tpu.dot_dimension_numbers<[1], [0], [0], [1], [0, 0, 1, 1], [], []>} : vector<16x128xf32>, vector<128x128xf32>, vector<16x128xf32> -> vector<16x128xf32>
    %cst_44 = arith.constant dense<0.000000e+00> : vector<16x128xf32>
    %57 = tpu.matmul %51, %47, %cst_44 {dimension_numbers = #tpu.dot_dimension_numbers<[1], [0], [0], [1], [0, 0, 1, 1], [], []>} : vector<16x16xf32>, vector<16x128xf32>, vector<16x128xf32> -> vector<16x128xf32>
    %58 = arith.addf %56, %57 : vector<16x128xf32>
    %59 = vector.broadcast %53 : vector<1x128xf32> to vector<16x128xf32>
    %60 = arith.addf %58, %59 : vector<16x128xf32>
    %61 = vector.broadcast %55 : vector<16x1xf32> to vector<16x128xf32>
    %62 = arith.addf %60, %61 : vector<16x128xf32>
    %63 = arith.addf %62, %47 : vector<16x128xf32>
    %cst_45 = arith.constant 0.00999999977 : f32
    %64 = vector.broadcast %cst_45 : f32 to vector<16x128xf32>
    %65 = arith.mulf %64, %63 : vector<16x128xf32>
    %66 = arith.maximumf %63, %65 : vector<16x128xf32>
    %c0_46 = arith.constant 0 : index
    %c0_47 = arith.constant 0 : index
    %67 = vector.load %arg7[%c0_46, %c0_47] : memref<16x128xf32, #tpu.memory_space<vmem>>, vector<16x128xf32>
    tpu.vector_store %arg7[%c0_46, %c0_47], %66 {strides = array<i32>} : memref<16x128xf32, #tpu.memory_space<vmem>>, vector<16x128xf32>,
    return
  }
  func.func @transform_0(%arg0: i32) -> i32 {
    %c0_i32 = arith.constant 0 : i32
    %c0_i32_0 = arith.constant 0 : i32
    return %c0_i32 : i32
  }
  func.func @transform_1(%arg0: i32) -> (i32, i32) {
    %c0_i32 = arith.constant 0 : i32
    %c0_i32_0 = arith.constant 0 : i32
    return %c0_i32, %arg0 : i32, i32
  }
  func.func @transform_2(%arg0: i32) -> (i32, i32, i32) {
    %c0_i32 = arith.constant 0 : i32
    %c0_i32_0 = arith.constant 0 : i32
    %c0_i32_1 = arith.constant 0 : i32
    %c0_i32_2 = arith.constant 0 : i32
    return %c0_i32, %c0_i32_0, %c0_i32_1 : i32, i32, i32
  }
  func.func @transform_3(%arg0: i32) -> (i32, i32, i32) {
    %c0_i32 = arith.constant 0 : i32
    %c0_i32_0 = arith.constant 0 : i32
    %c0_i32_1 = arith.constant 0 : i32
    %c0_i32_2 = arith.constant 0 : i32
    return %c0_i32, %c0_i32_0, %c0_i32_1 : i32, i32, i32
  }
  func.func @transform_4(%arg0: i32) -> (i32, i32, i32) {
    %c0_i32 = arith.constant 0 : i32
    %c0_i32_0 = arith.constant 0 : i32
    %c0_i32_1 = arith.constant 0 : i32
    %c0_i32_2 = arith.constant 0 : i32
    return %c0_i32, %c0_i32_0, %c0_i32_1 : i32, i32, i32
  }
  func.func @transform_5(%arg0: i32) -> (i32, i32, i32) {
    %c0_i32 = arith.constant 0 : i32
    %c0_i32_0 = arith.constant 0 : i32
    %c0_i32_1 = arith.constant 0 : i32
    %c0_i32_2 = arith.constant 0 : i32
    return %c0_i32, %c0_i32_0, %c0_i32_1 : i32, i32, i32
  }
  func.func @transform_6(%arg0: i32) -> (i32, i32) {
    %c0_i32 = arith.constant 0 : i32
    %c0_i32_0 = arith.constant 0 : i32
    return %c0_i32, %arg0 : i32, i32
  }
}

module attributes {stable_mosaic.version = 11 : i64} {
  func.func @kernel(%arg0: i32, %arg1: memref<3xf32, #tpu.memory_space<smem>>, %arg2: memref<16x128xf32, #tpu.memory_space<vmem>>, %arg3: memref<3x128x128xf32, #tpu.memory_space<vmem>>, %arg4: memref<3x16x16xf32, #tpu.memory_space<vmem>>, %arg5: memref<3x1x128xf32, #tpu.memory_space<vmem>>, %arg6: memref<3x16x1xf32, #tpu.memory_space<vmem>>, %arg7: memref<16x128xf32, #tpu.memory_space<vmem>>) attributes {dimension_semantics = [#tpu.dimension_semantics<parallel>], iteration_bounds = array<i64: 2>, scalar_prefetch = 0 : i64, scratch_operands = 0 : i64, tpu.core_type = #tpu.core_type<tc>, window_params = [{transform_indices = @transform_0, window_bounds = array<i64: 3>}, {transform_indices = @transform_1, window_bounds = array<i64: 16, 128>}, {pipeline_mode = #tpu.pipeline_mode<synchronous>, transform_indices = @transform_2, window_bounds = array<i64: 3, 128, 128>}, {pipeline_mode = #tpu.pipeline_mode<synchronous>, transform_indices = @transform_3, window_bounds = array<i64: 3, 16, 16>}, {pipeline_mode = #tpu.pipeline_mode<synchronous>, transform_indices = @transform_4, window_bounds = array<i64: 3, 1, 128>}, {pipeline_mode = #tpu.pipeline_mode<synchronous>, transform_indices = @transform_5, window_bounds = array<i64: 3, 16, 1>}, {transform_indices = @transform_6, window_bounds = array<i64: 16, 128>}]} {
    %c0 = arith.constant 0 : index
    %0 = memref.load %arg1[%c0] : memref<3xf32, #tpu.memory_space<smem>>
    %c1 = arith.constant 1 : index
    %1 = memref.load %arg1[%c1] : memref<3xf32, #tpu.memory_space<smem>>
    %c2 = arith.constant 2 : index
    %2 = memref.load %arg1[%c2] : memref<3xf32, #tpu.memory_space<smem>>
    %c0_0 = arith.constant 0 : index
    %c0_1 = arith.constant 0 : index
    %3 = vector.load %arg2[%c0_0, %c0_1] : memref<16x128xf32, #tpu.memory_space<vmem>>, vector<16x128xf32>
    %4 = vector.broadcast %0 : f32 to vector<16x128xf32>
    %5 = arith.subf %3, %4 : vector<16x128xf32>
    %6 = vector.broadcast %1 : f32 to vector<16x128xf32>
    %7 = arith.mulf %5, %6 : vector<16x128xf32>
    %8 = vector.broadcast %2 : f32 to vector<16x128xf32>
    %9 = arith.addf %7, %8 : vector<16x128xf32>
    %c0_2 = arith.constant 0 : index
    %c0_3 = arith.constant 0 : index
    %c0_4 = arith.constant 0 : index
    %10 = vector.load %arg3[%c0_2, %c0_3, %c0_4] : memref<3x128x128xf32, #tpu.memory_space<vmem>>, vector<1x128x128xf32>
    %11 = vector.shape_cast %10 : vector<1x128x128xf32> to vector<128x128xf32>
    %c0_5 = arith.constant 0 : index
    %c0_6 = arith.constant 0 : index
    %c0_7 = arith.constant 0 : index
    %12 = vector.load %arg4[%c0_5, %c0_6, %c0_7] : memref<3x16x16xf32, #tpu.memory_space<vmem>>, vector<1x16x16xf32>
    %13 = vector.shape_cast %12 : vector<1x16x16xf32> to vector<16x16xf32>
    %c0_8 = arith.constant 0 : index
    %c0_9 = arith.constant 0 : index
    %c0_10 = arith.constant 0 : index
    %14 = vector.load %arg5[%c0_8, %c0_9, %c0_10] : memref<3x1x128xf32, #tpu.memory_space<vmem>>, vector<1x1x128xf32>
    %15 = vector.shape_cast %14 : vector<1x1x128xf32> to vector<1x128xf32>
    %c0_11 = arith.constant 0 : index
    %c0_12 = arith.constant 0 : index
    %c0_13 = arith.constant 0 : index
    %16 = vector.load %arg6[%c0_11, %c0_12, %c0_13] : memref<3x16x1xf32, #tpu.memory_space<vmem>>, vector<1x16x1xf32>
    %17 = vector.shape_cast %16 : vector<1x16x1xf32> to vector<16x1xf32>
    %cst = arith.constant dense<0.000000e+00> : vector<16x128xf32>
    %18 = tpu.matmul %9, %11, %cst {dimension_numbers = #tpu.dot_dimension_numbers<[1], [0], [0], [1], [0, 0, 1, 1], [], []>} : vector<16x128xf32>, vector<128x128xf32>, vector<16x128xf32> -> vector<16x128xf32>
    %cst_14 = arith.constant dense<0.000000e+00> : vector<16x128xf32>
    %19 = tpu.matmul %13, %9, %cst_14 {dimension_numbers = #tpu.dot_dimension_numbers<[1], [0], [0], [1], [0, 0, 1, 1], [], []>} : vector<16x16xf32>, vector<16x128xf32>, vector<16x128xf32> -> vector<16x128xf32>
    %20 = arith.addf %18, %19 : vector<16x128xf32>
    %21 = vector.broadcast %15 : vector<1x128xf32> to vector<16x128xf32>
    %22 = arith.addf %20, %21 : vector<16x128xf32>
    %23 = vector.broadcast %17 : vector<16x1xf32> to vector<16x128xf32>
    %24 = arith.addf %22, %23 : vector<16x128xf32>
    %25 = arith.addf %24, %9 : vector<16x128xf32>
    %cst_15 = arith.constant 0.00999999977 : f32
    %26 = vector.broadcast %cst_15 : f32 to vector<16x128xf32>
    %27 = arith.mulf %26, %25 : vector<16x128xf32>
    %28 = arith.maximumf %25, %27 : vector<16x128xf32>
    %c1_16 = arith.constant 1 : index
    %c0_17 = arith.constant 0 : index
    %c0_18 = arith.constant 0 : index
    %29 = vector.load %arg3[%c1_16, %c0_17, %c0_18] : memref<3x128x128xf32, #tpu.memory_space<vmem>>, vector<1x128x128xf32>
    %30 = vector.shape_cast %29 : vector<1x128x128xf32> to vector<128x128xf32>
    %c1_19 = arith.constant 1 : index
    %c0_20 = arith.constant 0 : index
    %c0_21 = arith.constant 0 : index
    %31 = vector.load %arg4[%c1_19, %c0_20, %c0_21] : memref<3x16x16xf32, #tpu.memory_space<vmem>>, vector<1x16x16xf32>
    %32 = vector.shape_cast %31 : vector<1x16x16xf32> to vector<16x16xf32>
    %c1_22 = arith.constant 1 : index
    %c0_23 = arith.constant 0 : index
    %c0_24 = arith.constant 0 : index
    %33 = vector.load %arg5[%c1_22, %c0_23, %c0_24] : memref<3x1x128xf32, #tpu.memory_space<vmem>>, vector<1x1x128xf32>
    %34 = vector.shape_cast %33 : vector<1x1x128xf32> to vector<1x128xf32>
    %c1_25 = arith.constant 1 : index
    %c0_26 = arith.constant 0 : index
    %c0_27 = arith.constant 0 : index
    %35 = vector.load %arg6[%c1_25, %c0_26, %c0_27] : memref<3x16x1xf32, #tpu.memory_space<vmem>>, vector<1x16x1xf32>
    %36 = vector.shape_cast %35 : vector<1x16x1xf32> to vector<16x1xf32>
    %cst_28 = arith.constant dense<0.000000e+00> : vector<16x128xf32>
    %37 = tpu.matmul %28, %30, %cst_28 {dimension_numbers = #tpu.dot_dimension_numbers<[1], [0], [0], [1], [0, 0, 1, 1], [], []>} : vector<16x128xf32>, vector<128x128xf32>, vector<16x128xf32> -> vector<16x128xf32>
    %cst_29 = arith.constant dense<0.000000e+00> : vector<16x128xf32>
    %38 = tpu.matmul %32, %28, %cst_29 {dimension_numbers = #tpu.dot_dimension_numbers<[1], [0], [0], [1], [0, 0, 1, 1], [], []>} : vector<16x16xf32>, vector<16x128xf32>, vector<16x128xf32> -> vector<16x128xf32>
    %39 = arith.addf %37, %38 : vector<16x128xf32>
    %40 = vector.broadcast %34 : vector<1x128xf32> to vector<16x128xf32>
    %41 = arith.addf %39, %40 : vector<16x128xf32>
    %42 = vector.broadcast %36 : vector<16x1xf32> to vector<16x128xf32>
    %43 = arith.addf %41, %42 : vector<16x128xf32>
    %44 = arith.addf %43, %28 : vector<16x128xf32>
    %cst_30 = arith.constant 0.00999999977 : f32
    %45 = vector.broadcast %cst_30 : f32 to vector<16x128xf32>
    %46 = arith.mulf %45, %44 : vector<16x128xf32>
    %47 = arith.maximumf %44, %46 : vector<16x128xf32>
    %c2_31 = arith.constant 2 : index
    %c0_32 = arith.constant 0 : index
    %c0_33 = arith.constant 0 : index
    %48 = vector.load %arg3[%c2_31, %c0_32, %c0_33] : memref<3x128x128xf32, #tpu.memory_space<vmem>>, vector<1x128x128xf32>
    %49 = vector.shape_cast %48 : vector<1x128x128xf32> to vector<128x128xf32>
    %c2_34 = arith.constant 2 : index
    %c0_35 = arith.constant 0 : index
    %c0_36 = arith.constant 0 : index
    %50 = vector.load %arg4[%c2_34, %c0_35, %c0_36] : memref<3x16x16xf32, #tpu.memory_space<vmem>>, vector<1x16x16xf32>
    %51 = vector.shape_cast %50 : vector<1x16x16xf32> to vector<16x16xf32>
    %c2_37 = arith.constant 2 : index
    %c0_38 = arith.constant 0 : index
    %c0_39 = arith.constant 0 : index
    %52 = vector.load %arg5[%c2_37, %c0_38, %c0_39] : memref<3x1x128xf32, #tpu.memory_space<vmem>>, vector<1x1x128xf32>
    %53 = vector.shape_cast %52 : vector<1x1x128xf32> to vector<1x128xf32>
    %c2_40 = arith.constant 2 : index
    %c0_41 = arith.constant 0 : index
    %c0_42 = arith.constant 0 : index
    %54 = vector.load %arg6[%c2_40, %c0_41, %c0_42] : memref<3x16x1xf32, #tpu.memory_space<vmem>>, vector<1x16x1xf32>
    %55 = vector.shape_cast %54 : vector<1x16x1xf32> to vector<16x1xf32>
    %cst_43 = arith.constant dense<0.000000e+00> : vector<16x128xf32>
    %56 = tpu.matmul %47, %49, %cst_43 {dimension_numbers = #tpu.dot_dimension_numbers<[1], [0], [0], [1], [0, 0, 1, 1], [], []>} : vector<16x128xf32>, vector<128x128xf32>, vector<16x128xf32> -> vector<16x128xf32>
    %cst_44 = arith.constant dense<0.000000e+00> : vector<16x128xf32>
    %57 = tpu.matmul %51, %47, %cst_44 {dimension_numbers = #tpu.dot_dimension_numbers<[1], [0], [0], [1], [0, 0, 1, 1], [], []>} : vector<16x16xf32>, vector<16x128xf32>, vector<16x128xf32> -> vector<16x128xf32>
    %58 = arith.addf %56, %57 : vector<16x128xf32>
    %59 = vector.broadcast %53 : vector<1x128xf32> to vector<16x128xf32>
    %60 = arith.addf %58, %59 : vector<16x128xf32>
    %61 = vector.broadcast %55 : vector<16x1xf32> to vector<16x128xf32>
    %62 = arith.addf %60, %61 : vector<16x128xf32>
    %63 = arith.addf %62, %47 : vector<16x128xf32>
    %cst_45 = arith.constant 0.00999999977 : f32
    %64 = vector.broadcast %cst_45 : f32 to vector<16x128xf32>
    %65 = arith.mulf %64, %63 : vector<16x128xf32>
    %66 = arith.maximumf %63, %65 : vector<16x128xf32>
    %c0_46 = arith.constant 0 : index
    %c0_47 = arith.constant 0 : index
    %67 = vector.load %arg7[%c0_46, %c0_47] : memref<16x128xf32, #tpu.memory_space<vmem>>, vector<16x128xf32>
    tpu.vector_store %arg7[%c0_46, %c0_47], %66 {strides = array<i32>} : memref<16x128xf32, #tpu.memory_space<vmem>>, vector<16x128xf32>,
    return
  }
  func.func @transform_0(%arg0: i32) -> i32 {
    %c0_i32 = arith.constant 0 : i32
    %c0_i32_0 = arith.constant 0 : i32
    return %c0_i32 : i32
  }
  func.func @transform_1(%arg0: i32) -> (i32, i32) {
    %c0_i32 = arith.constant 0 : i32
    %c0_i32_0 = arith.constant 0 : i32
    return %c0_i32, %arg0 : i32, i32
  }
  func.func @transform_2(%arg0: i32) -> (i32, i32, i32) {
    %c0_i32 = arith.constant 0 : i32
    %c0_i32_0 = arith.constant 0 : i32
    %c0_i32_1 = arith.constant 0 : i32
    %c0_i32_2 = arith.constant 0 : i32
    return %c0_i32, %c0_i32_0, %c0_i32_1 : i32, i32, i32
  }
  func.func @transform_3(%arg0: i32) -> (i32, i32, i32) {
    %c0_i32 = arith.constant 0 : i32
    %c0_i32_0 = arith.constant 0 : i32
    %c0_i32_1 = arith.constant 0 : i32
    %c0_i32_2 = arith.constant 0 : i32
    return %c0_i32, %c0_i32_0, %c0_i32_1 : i32, i32, i32
  }
  func.func @transform_4(%arg0: i32) -> (i32, i32, i32) {
    %c0_i32 = arith.constant 0 : i32
    %c0_i32_0 = arith.constant 0 : i32
    %c0_i32_1 = arith.constant 0 : i32
    %c0_i32_2 = arith.constant 0 : i32
    return %c0_i32, %c0_i32_0, %c0_i32_1 : i32, i32, i32
  }
  func.func @transform_5(%arg0: i32) -> (i32, i32, i32) {
    %c0_i32 = arith.constant 0 : i32
    %c0_i32_0 = arith.constant 0 : i32
    %c0_i32_1 = arith.constant 0 : i32
    %c0_i32_2 = arith.constant 0 : i32
    return %c0_i32, %c0_i32_0, %c0_i32_1 : i32, i32, i32
  }
  func.func @transform_6(%arg0: i32) -> (i32, i32) {
    %c0_i32 = arith.constant 0 : i32
    %c0_i32_0 = arith.constant 0 : i32
    return %c0_i32, %arg0 : i32, i32
  }
}

</mosaic_0001>

<llo_original>
// kernel: generative_forward.1
$region0: #{generative_forward.1}
  #allocation0 [shape = 'u32[]', space=smem, size = 0x4, offset = 0x4, fixed_abs, tag = 'smem constant byte address 0x4 - core index']
  #allocation1 [shape = 'u32[144,128]{1,0:T(1,128)}', space=vmem, size = 0x12000, scoped, tag = 'internal scratch']
  %s0 = inlined_call_operand.vmem [shape: f32[3], index: 0, kind: input, shape index: {}]
  %s1 = inlined_call_operand.vmem [shape: f32[16,256], index: 1, kind: input, shape index: {}]
  %s2 = inlined_call_operand.vmem [shape: f32[3,128,128], index: 2, kind: input, shape index: {}]
  %s3 = inlined_call_operand.vmem [shape: f32[3,16,16], index: 3, kind: input, shape index: {}]
  %s4 = inlined_call_operand.vmem [shape: f32[3,1,128], index: 4, kind: input, shape index: {}]
  %s5 = inlined_call_operand.vmem [shape: f32[3,16,1], index: 5, kind: input, shape index: {}]
  %s6 = inlined_call_operand.vmem [shape: f32[16,256], index: 6, kind: output, shape index: {}]
  %s7 = sld [smem:[#allocation0]]
  $region133: #{generative_forward.1} parent=0
    _
  %s9 = ssub.s32 1, %s7
  %s10 = scalar_select 0, %s9, %s7
  $region1: #{generative_forward.1} parent=0
    #allocation2 [shape = 'u8[512]{0}', space=smem, size = 0x200, scoped, tag = 'input window, operand 0, single buffered']
    #allocation3 [shape = 's32[2]{0}', space=sflag, size = 0x8, scoped, tag = 'scoped memory for generative_forward.1']
    #allocation4 [shape = 'u8[16384]{0}', space=vmem, size = 0x4000, scoped, tag = 'input window, operand 1']
    #allocation5 [shape = 'u8[16384]{0}', space=vmem, size = 0x4000, scoped, tag = 'output window, operand 0']
    %11 = vsyncpa [#allocation3], 0
    loop: start=0, step=1, limit=4
    $region2: #{generative_forward.1} parent=1 // loop_pre_header
      _
    $region3: #{generative_forward.1} parent=1 // loop_header
      %s13 = sphi 0, %s17
      %p14 = scmp.ge.s32.totalorder %s13, 4
      %s21 = sphi 0, %s21
      %s23 = sphi 0, %s21
      %s24 = sphi 0, %s23
      %s38 = sphi 0, %s24
      %s44 = sphi 0, %s46
      %s47 = sphi 0, %s44
      %s48 = sphi 0, %s47
      %s64 = sphi 0, %s48
      %s68 = sphi 0, %s68
      %s70 = sphi 0, %s68
      %s71 = sphi 0, %s70
      %s85 = sphi 0, %s71
      %s89 = sphi 0, %s89
      %s91 = sphi 0, %s89
      %s92 = sphi 0, %s91
      %s106 = sphi 0, %s92
      %s110 = sphi 0, %s110
      %s112 = sphi 0, %s110
      %s113 = sphi 0, %s112
      %s127 = sphi 0, %s113
      %s131 = sphi 0, %s131
      %s133 = sphi 0, %s131
      %s134 = sphi 0, %s133
      %s148 = sphi 0, %s134
      %s154 = sphi 0, %s156
      %s157 = sphi 0, %s154
      %s158 = sphi 0, %s157
      %s174 = sphi 0, %s158
    $region4: #{generative_forward.1} parent=1 // loop_header_branch
      %16 = sbr.rel (%p14) target = $region8
    $region5: #{generative_forward.1} parent=1 // loop_body
      %s18 = ssub.s32 %s13, 1
      %s19 = ssub.s32 %s13, 2
      %s20 = sadd.s32 %s13, 1
      %s22 = sadd.s32 %s21, 1
      %p25 = scmp.eq.s32.totalorder %s13, 1
      %p26 = scmp.ne.s32.totalorder %s21, %s23
      %p27 = scmp.eq.s32.totalorder %s13, 0
      %p28 = por %p26, %p27
      %p29 = scmp.ne.s32.totalorder %s21, %s23
      %p30 = scmp.eq.s32.totalorder %s18, 1
      %p31 = por %p29, %p30
      %p32 = scmp.ne.s32.totalorder %s23, %s24
      %p33 = scmp.eq.s32.totalorder %s18, 0
      %p34 = por %p32, %p33
      %p35 = scmp.ne.s32.totalorder %s23, %s24
      %p36 = scmp.eq.s32.totalorder %s19, 1
      %p37 = por %p35, %p36
      %p39 = scmp.ne.s32.totalorder %s24, %s38
      %p40 = scmp.eq.s32.totalorder %s19, 0
      %p41 = por %p39, %p40
      %s42 = ssub.s32 %s13, %s20
      %p43 = scmp.eq.s32.totalorder %s42, 0
      %s45 = sadd.s32 %s44, 1
      %s46 = scalar_select %p43, %s44, %s45
      %p49 = pneg %p43
      %p50 = scmp.eq.s32.totalorder %s13, 1
      %p51 = por %p49, %p50
      %p52 = scmp.ne.s32.totalorder %s44, %s47
      %p53 = scmp.eq.s32.totalorder %s13, 0
      %p54 = por %p52, %p53
      %p55 = scmp.ne.s32.totalorder %s44, %s47
      %p56 = scmp.eq.s32.totalorder %s18, 1
      %p57 = por %p55, %p56
      %p58 = scmp.ne.s32.totalorder %s47, %s48
      %p59 = scmp.eq.s32.totalorder %s18, 0
      %p60 = por %p58, %p59
      %p61 = scmp.ne.s32.totalorder %s47, %s48
      %p62 = scmp.eq.s32.totalorder %s19, 1
      %p63 = por %p61, %p62
      %p65 = scmp.ne.s32.totalorder %s48, %s64
      %p66 = scmp.eq.s32.totalorder %s19, 0
      %p67 = por %p65, %p66
      %s69 = sadd.s32 %s68, 1
      %p72 = scmp.eq.s32.totalorder %s13, 1
      %p73 = scmp.ne.s32.totalorder %s68, %s70
      %p74 = scmp.eq.s32.totalorder %s13, 0
      %p75 = por %p73, %p74
      %p76 = scmp.ne.s32.totalorder %s68, %s70
      %p77 = scmp.eq.s32.totalorder %s18, 1
      %p78 = por %p76, %p77
      %p79 = scmp.ne.s32.totalorder %s70, %s71
      %p80 = scmp.eq.s32.totalorder %s18, 0
      %p81 = por %p79, %p80
      %p82 = scmp.ne.s32.totalorder %s70, %s71
      %p83 = scmp.eq.s32.totalorder %s19, 1
      %p84 = por %p82, %p83
      %p86 = scmp.ne.s32.totalorder %s71, %s85
      %p87 = scmp.eq.s32.totalorder %s19, 0
      %p88 = por %p86, %p87
      %s90 = sadd.s32 %s89, 1
      %p93 = scmp.eq.s32.totalorder %s13, 1
      %p94 = scmp.ne.s32.totalorder %s89, %s91
      %p95 = scmp.eq.s32.totalorder %s13, 0
      %p96 = por %p94, %p95
      %p97 = scmp.ne.s32.totalorder %s89, %s91
      %p98 = scmp.eq.s32.totalorder %s18, 1
      %p99 = por %p97, %p98
      %p100 = scmp.ne.s32.totalorder %s91, %s92
      %p101 = scmp.eq.s32.totalorder %s18, 0
      %p102 = por %p100, %p101
      %p103 = scmp.ne.s32.totalorder %s91, %s92
      %p104 = scmp.eq.s32.totalorder %s19, 1
      %p105 = por %p103, %p104
      %p107 = scmp.ne.s32.totalorder %s92, %s106
      %p108 = scmp.eq.s32.totalorder %s19, 0
      %p109 = por %p107, %p108
      %s111 = sadd.s32 %s110, 1
      %p114 = scmp.eq.s32.totalorder %s13, 1
      %p115 = scmp.ne.s32.totalorder %s110, %s112
      %p116 = scmp.eq.s32.totalorder %s13, 0
      %p117 = por %p115, %p116
      %p118 = scmp.ne.s32.totalorder %s110, %s112
      %p119 = scmp.eq.s32.totalorder %s18, 1
      %p120 = por %p118, %p119
      %p121 = scmp.ne.s32.totalorder %s112, %s113
      %p122 = scmp.eq.s32.totalorder %s18, 0
      %p123 = por %p121, %p122
      %p124 = scmp.ne.s32.totalorder %s112, %s113
      %p125 = scmp.eq.s32.totalorder %s19, 1
      %p126 = por %p124, %p125
      %p128 = scmp.ne.s32.totalorder %s113, %s127
      %p129 = scmp.eq.s32.totalorder %s19, 0
      %p130 = por %p128, %p129
      %s132 = sadd.s32 %s131, 1
      %p135 = scmp.eq.s32.totalorder %s13, 1
      %p136 = scmp.ne.s32.totalorder %s131, %s133
      %p137 = scmp.eq.s32.totalorder %s13, 0
      %p138 = por %p136, %p137
      %p139 = scmp.ne.s32.totalorder %s131, %s133
      %p140 = scmp.eq.s32.totalorder %s18, 1
      %p141 = por %p139, %p140
      %p142 = scmp.ne.s32.totalorder %s133, %s134
      %p143 = scmp.eq.s32.totalorder %s18, 0
      %p144 = por %p142, %p143
      %p145 = scmp.ne.s32.totalorder %s133, %s134
      %p146 = scmp.eq.s32.totalorder %s19, 1
      %p147 = por %p145, %p146
      %p149 = scmp.ne.s32.totalorder %s134, %s148
      %p150 = scmp.eq.s32.totalorder %s19, 0
      %p151 = por %p149, %p150
      %s152 = ssub.s32 %s13, %s20
      %p153 = scmp.eq.s32.totalorder %s152, 0
      %s155 = sadd.s32 %s154, 1
      %s156 = scalar_select %p153, %s154, %s155
      %p159 = pneg %p153
      %p160 = scmp.eq.s32.totalorder %s13, 1
      %p161 = por %p159, %p160
      %p162 = scmp.ne.s32.totalorder %s154, %s157
      %p163 = scmp.eq.s32.totalorder %s13, 0
      %p164 = por %p162, %p163
      %p165 = scmp.ne.s32.totalorder %s154, %s157
      %p166 = scmp.eq.s32.totalorder %s18, 1
      %p167 = por %p165, %p166
      %p168 = scmp.ne.s32.totalorder %s157, %s158
      %p169 = scmp.eq.s32.totalorder %s18, 0
      %p170 = por %p168, %p169
      %p171 = scmp.ne.s32.totalorder %s157, %s158
      %p172 = scmp.eq.s32.totalorder %s19, 1
      %p173 = por %p171, %p172
      %p175 = scmp.ne.s32.totalorder %s158, %s174
      %p176 = scmp.eq.s32.totalorder %s19, 0
      %p177 = por %p175, %p176
      %p178 = scmp.le.s32.totalorder 1, %s13
      %p179 = scmp.lt.s32.totalorder %s13, 3
      %p180 = pnand %p178, %p179
      %p181 = pneg %p180
      // Predicated region
      $region9: #{generative_forward.1} parent=5 // pred_check
        _
      $region10: #{generative_forward.1} parent=5 // pred_check_branch
        %183 = sbr.rel (%p180) target = $region12
      $region11: #{generative_forward.1} parent=5 // pred_region
        %s184 = ssub.s32 %s13, 1
        // Predicated region
        $region13: #{generative_forward.1} parent=11 // pred_check
          %p185 = pneg %p34
        $region14: #{generative_forward.1} parent=11 // pred_check_branch
          %187 = sbr.rel (%p185) target = $region16
        $region15: #{generative_forward.1} parent=11 // pred_region
          %s189 = ssub.s32 16, 16
          %190 = vsyncadd [#allocation3], %s189
          %s192 = sshll.u32 %s0, 4
          %s193 = int_to_ptr.vmem [resolvable:$true] %s192
          %195 = dma.vmem_to_smem %s193, 16, [#allocation2], [#allocation3]
        $region16: #{generative_forward.1} parent=11 // pred_fallthru
          _
        // Predicated region
        $region17: #{generative_forward.1} parent=11 // pred_check
          %p196 = pneg %p81
        $region18: #{generative_forward.1} parent=11 // pred_check_branch
          %198 = sbr.rel (%p196) target = $region20
        $region19: #{generative_forward.1} parent=11 // pred_region
          _
        $region20: #{generative_forward.1} parent=11 // pred_fallthru
          _
        // Predicated region
        $region21: #{generative_forward.1} parent=11 // pred_check
          %p199 = pneg %p102
        $region22: #{generative_forward.1} parent=11 // pred_check_branch
          %201 = sbr.rel (%p199) target = $region24
        $region23: #{generative_forward.1} parent=11 // pred_region
          _
        $region24: #{generative_forward.1} parent=11 // pred_fallthru
          _
        // Predicated region
        $region25: #{generative_forward.1} parent=11 // pred_check
          %p202 = pneg %p123
        $region26: #{generative_forward.1} parent=11 // pred_check_branch
          %204 = sbr.rel (%p202) target = $region28
        $region27: #{generative_forward.1} parent=11 // pred_region
          _
        $region28: #{generative_forward.1} parent=11 // pred_fallthru
          _
        // Predicated region
        $region29: #{generative_forward.1} parent=11 // pred_check
          %p205 = pneg %p144
        $region30: #{generative_forward.1} parent=11 // pred_check_branch
          %207 = sbr.rel (%p205) target = $region32
        $region31: #{generative_forward.1} parent=11 // pred_region
          _
        $region32: #{generative_forward.1} parent=11 // pred_fallthru
          _
      $region12: #{generative_forward.1} parent=5 // pred_fallthru
        _
      %p208 = scmp.lt.s32.totalorder %s13, 2
      // Predicated region
      $region33: #{generative_forward.1} parent=5 // pred_check
        %p209 = pneg %p208
      $region34: #{generative_forward.1} parent=5 // pred_check_branch
        %211 = sbr.rel (%p209) target = $region36
      $region35: #{generative_forward.1} parent=5 // pred_region
        // Predicated region
        $region37: #{generative_forward.1} parent=35 // pred_check
          %p212 = pneg %p54
        $region38: #{generative_forward.1} parent=35 // pred_check_branch
          %214 = sbr.rel (%p212) target = $region40
        $region39: #{generative_forward.1} parent=35 // pred_region
          %s215 = sand.u32 %s44, 1
          %s216 = sand.u32 %s44, 1
          %s217 = smul.addr %s216, 16
          %s218 = scalar_lea.vmem [#allocation4], %s217
          %s219 = smul.addr %s13, 8
          %s220 = scalar_lea.vmem %s1, %s219
          // Predicated region
          $region41: #{generative_forward.1} parent=39 // pred_check
            _
          $region42: #{generative_forward.1} parent=39 // pred_check_branch
            %222 = sbr.rel (0) target = $region44
          $region43: #{generative_forward.1} parent=39 // pred_region
            // Predicated region
            $region45: #{generative_forward.1} parent=43 // pred_check
              _
            $region46: #{generative_forward.1} parent=43 // pred_check_branch
              %224 = sbr.rel (0) target = $region48
            $region47: #{generative_forward.1} parent=43 // pred_region
              // Predicated region
              $region60: #{generative_forward.1} parent=47 // pred_check
                _
              $region61: #{generative_forward.1} parent=47 // pred_check_branch
                %242 = sbr.rel (0) target = $region63
              $region62: #{generative_forward.1} parent=47 // pred_region
                loop: start=0, step=1, limit=1
                $region64: #{generative_forward.1} parent=62 // loop_pre_header
                  _
                $region65: #{generative_forward.1} parent=62 // loop_header
                  %s244 = sphi 0, %s248
                  %p245 = scmp.ge.s32.totalorder %s244, 1
                  %s249 = sphi %s220, %s220
                  %s250 = sphi %s218, %s218
                $region66: #{generative_forward.1} parent=62 // loop_header_branch
                  %247 = sbr.rel (%p245) target = $region70
                $region67: #{generative_forward.1} parent=62 // loop_body
                  %v251 = vld [vmem:[%s249] sm:$0xff]
                  %252 = vst [vmem:[%s250] sm:$0xff] %v251
                  %v253 = vld [vmem:[%s249 + $0x10] sm:$0xff]
                  %254 = vst [vmem:[%s250 + $0x8] sm:$0xff] %v253
                $region68: #{generative_forward.1} parent=62 // loop_footer
                  %s248 = sadd.s32 1, %s244
                $region69: #{generative_forward.1} parent=62 // loop_footer_branch
                  %243 = sbr.rel target = $region65
                $region70: #{generative_forward.1} parent=62 // loop_exit
                  _
              $region63: #{generative_forward.1} parent=47 // pred_fallthru
                _
              // Predicated region
              $region71: #{generative_forward.1} parent=47 // pred_check
                _
              $region72: #{generative_forward.1} parent=47 // pred_check_branch
                %256 = sbr.rel target = $region74
              $region73: #{generative_forward.1} parent=47 // pred_region
                _
              $region74: #{generative_forward.1} parent=47 // pred_fallthru
                _
            $region48: #{generative_forward.1} parent=43 // pred_fallthru
              _
            // Predicated region
            $region49: #{generative_forward.1} parent=43 // pred_check
              _
            $region50: #{generative_forward.1} parent=43 // pred_check_branch
              %226 = sbr.rel target = $region52
            $region51: #{generative_forward.1} parent=43 // pred_region
              %s228 = ssub.s32 256, 1
              loop: start=0, step=1, limit=1
              $region53: #{generative_forward.1} parent=51 // loop_pre_header
                _
              $region54: #{generative_forward.1} parent=51 // loop_header
                %s230 = sphi 0, %s234
                %p231 = scmp.ge.s32.totalorder %s230, 1
                %s235 = sphi %s220, %s220
                %s236 = sphi %s218, %s218
              $region55: #{generative_forward.1} parent=51 // loop_header_branch
                %233 = sbr.rel (%p231) target = $region59
              $region56: #{generative_forward.1} parent=51 // loop_body
                %v237 = vld [vmem:[%s235] sm:%s228]
                %238 = vst [vmem:[%s236] sm:%s228] %v237
                %v239 = vld [vmem:[%s235 + $0x10] sm:%s228]
                %240 = vst [vmem:[%s236 + $0x8] sm:%s228] %v239
              $region57: #{generative_forward.1} parent=51 // loop_footer
                %s234 = sadd.s32 1, %s230
              $region58: #{generative_forward.1} parent=51 // loop_footer_branch
                %229 = sbr.rel target = $region54
              $region59: #{generative_forward.1} parent=51 // loop_exit
                _
            $region52: #{generative_forward.1} parent=43 // pred_fallthru
              _
          $region44: #{generative_forward.1} parent=39 // pred_fallthru
            _
          %257 = vnop
        $region40: #{generative_forward.1} parent=35 // pred_fallthru
          _
      $region36: #{generative_forward.1} parent=5 // pred_fallthru
        _
      %p258 = scmp.le.s32.totalorder 1, %s13
      %p259 = scmp.lt.s32.totalorder %s13, 3
      %p260 = pnand %p258, %p259
      %p261 = pneg %p260
      // Predicated region
      $region75: #{generative_forward.1} parent=5 // pred_check
        _
      $region76: #{generative_forward.1} parent=5 // pred_check_branch
        %263 = sbr.rel (%p260) target = $region78
      $region77: #{generative_forward.1} parent=5 // pred_region
        %s264 = ssub.s32 %s13, 1
        // Predicated region
        $region79: #{generative_forward.1} parent=77 // pred_check
          %p265 = pneg %p34
        $region80: #{generative_forward.1} parent=77 // pred_check_branch
          %267 = sbr.rel (%p265) target = $region82
        $region81: #{generative_forward.1} parent=77 // pred_region
          %268 = dma.done [#allocation3], 16
        $region82: #{generative_forward.1} parent=77 // pred_fallthru
          _
        %s269 = sand.u32 %s47, 1
        %s270 = sand.u32 %s47, 1
        %s271 = smul.addr %s270, 16
        %s272 = scalar_lea.vmem [#allocation4], %s271
        // Predicated region
        $region83: #{generative_forward.1} parent=77 // pred_check
          %p273 = pneg %p60
        $region84: #{generative_forward.1} parent=77 // pred_check_branch
          %275 = sbr.rel (%p273) target = $region86
        $region85: #{generative_forward.1} parent=77 // pred_region
          _
        $region86: #{generative_forward.1} parent=77 // pred_fallthru
          _
        %276 = sfence
        %p277 = pneg %p34
        %p278 = pneg %p31
        %s279 = sand.u32 %s47, 1
        %s280 = sand.u32 %s47, 1
        %s281 = smul.addr %s280, 16
        %s282 = scalar_lea.vmem [#allocation4], %s281
        %p283 = pneg %p60
        %p284 = pneg %p57
        %p285 = pneg %p81
        %p286 = pneg %p78
        %p287 = pneg %p102
        %p288 = pneg %p99
        %p289 = pneg %p123
        %p290 = pneg %p120
        %p291 = pneg %p144
        %p292 = pneg %p141
        %p293 = pneg %p170
        %p294 = pneg %p167
        %s295 = sand.u32 %s157, 1
        %s296 = sand.u32 %s157, 1
        %s297 = smul.addr %s296, 16
        %s298 = scalar_lea.vmem [#allocation5], %s297
        %s299 = sld [smem:[#allocation2]]
        %s300 = sld [smem:[#allocation2 + $0x1]]
        %s301 = sld [smem:[#allocation2 + $0x2]]
        %v302 = vld [vmem:[%s272] sm:$0xff]
        %v303 = vld [vmem:[%s272 + $0x8] sm:$0xff]
        %v304 = vstv %s299
        %v305 = vsub.f32 %v302, %v304
        %v306 = vsub.f32 %v303, %v304
        %v307 = vstv %s300
        %v308 = vmul.f32 %v305, %v307
        %v309 = vmul.f32 %v306, %v307
        %v310 = vstv %s301
        %v311 = vadd.f32 %v308, %v310
        %v312 = vadd.f32 %v309, %v310
        %v313 = vld [vmem:[%s2] sm:$0xff]
        %v314 = vld [vmem:[%s2 + $0x8] sm:$0xff]
        %v315 = vld [vmem:[%s2 + $0x10] sm:$0xff]
        %v316 = vld [vmem:[%s2 + $0x18] sm:$0xff]
        %v317 = vld [vmem:[%s2 + $0x20] sm:$0xff]
        %v318 = vld [vmem:[%s2 + $0x28] sm:$0xff]
        %v319 = vld [vmem:[%s2 + $0x30] sm:$0xff]
        %v320 = vld [vmem:[%s2 + $0x38] sm:$0xff]
        %v321 = vld [vmem:[%s2 + $0x40] sm:$0xff]
        %v322 = vld [vmem:[%s2 + $0x48] sm:$0xff]
        %v323 = vld [vmem:[%s2 + $0x50] sm:$0xff]
        %v324 = vld [vmem:[%s2 + $0x58] sm:$0xff]
        %v325 = vld [vmem:[%s2 + $0x60] sm:$0xff]
        %v326 = vld [vmem:[%s2 + $0x68] sm:$0xff]
        %v327 = vld [vmem:[%s2 + $0x70] sm:$0xff]
        %v328 = vld [vmem:[%s2 + $0x78] sm:$0xff]
        %v329 = vld [vmem:[%s3] sm:$0xff]
        %v330 = vld [vmem:[%s3 + $0x8] sm:$0xff]
        %v331 = vld [vmem:[%s4] sm:$0x1]
        %v332 = vld [vmem:[%s5] sm:$0xff]
        %v333 = vld [vmem:[%s5 + $0x8] sm:$0xff]
        %vm334 = vcmask 130048
        %v336 = vsel %vm334, %v329, 0
        %v339 = vsel %vm334, %v330, 0
        %341 = vmatprep.subr.mxu0 0.0
        %342 = vmatpush1.msra.mxu0 0.0
        %343 = vmatprep.subr.mxu0 0.0
        %344 = vmatpush1.msra.mxu0 0.0
        %345 = vmatprep.subr.mxu0 0.0
        %346 = vmatpush1.msra.mxu0 0.0
        %347 = vmatprep.subr.mxu0 0.0
        %348 = vmatpush1.msra.mxu0 0.0
        %349 = vmatprep.subr.mxu0 0.0
        %350 = vmatpush1.msra.mxu0 0.0
        %351 = vmatprep.subr.mxu0 0.0
        %352 = vmatpush1.msra.mxu0 0.0
        %353 = vmatprep.subr.mxu0 0.0
        %354 = vmatpush1.msra.mxu0 0.0
        %355 = vmatprep.subr.mxu0 0.0
        %356 = vmatpush1.msra.mxu0 0.0
        %357 = vmatprep.subr.mxu0 0.0
        %358 = vmatpush1.msra.mxu0 0.0
        %359 = vmatprep.subr.mxu0 0.0
        %360 = vmatpush1.msra.mxu0 0.0
        %361 = vmatprep.subr.mxu0 0.0
        %362 = vmatpush1.msra.mxu0 0.0
        %363 = vmatprep.subr.mxu0 0.0
        %364 = vmatpush1.msra.mxu0 0.0
        %365 = vmatprep.subr.mxu0 0.0
        %366 = vmatpush1.msra.mxu0 0.0
        %367 = vmatprep.subr.mxu0 0.0
        %368 = vmatpush1.msra.mxu0 0.0
        %369 = vmatprep.subr.mxu0 0.0
        %370 = vmatpush1.msra.mxu0 %v312
        %371 = vmatprep.subr.mxu0 0.0
        %372 = vmatpush1.msra.mxu0 %v311
        %373 = vmatprep.subr.mxu0 0.0
        %374 = vmatpush2.msra.mxu0 0.0
        %375 = vmatprep.subr.mxu0 0.0
        %376 = vmatpush2.msra.mxu0 0.0
        %377 = vmatprep.subr.mxu0 0.0
        %378 = vmatpush2.msra.mxu0 0.0
        %379 = vmatprep.subr.mxu0 0.0
        %380 = vmatpush2.msra.mxu0 0.0
        %381 = vmatprep.subr.mxu0 0.0
        %382 = vmatpush2.msra.mxu0 0.0
        %383 = vmatprep.subr.mxu0 0.0
        %384 = vmatpush2.msra.mxu0 0.0
        %385 = vmatprep.subr.mxu0 0.0
        %386 = vmatpush2.msra.mxu0 0.0
        %387 = vmatprep.subr.mxu0 0.0
        %388 = vmatpush2.msra.mxu0 0.0
        %389 = vmatprep.subr.mxu0 0.0
        %390 = vmatpush2.msra.mxu0 0.0
        %391 = vmatprep.subr.mxu0 0.0
        %392 = vmatpush2.msra.mxu0 0.0
        %393 = vmatprep.subr.mxu0 0.0
        %394 = vmatpush2.msra.mxu0 0.0
        %395 = vmatprep.subr.mxu0 0.0
        %396 = vmatpush2.msra.mxu0 0.0
        %397 = vmatprep.subr.mxu0 0.0
        %398 = vmatpush2.msra.mxu0 0.0
        %399 = vmatprep.subr.mxu0 0.0
        %400 = vmatpush2.msra.mxu0 0.0
        %401 = vmatprep.subr.mxu0 0.0
        %402 = vmatpush2.msra.mxu0 0.0
        %403 = vmatprep.subr.mxu0 0.0
        %404 = vmatpush2.msra.mxu0 0.0
        %405 = vmatprep.mubr.f32.mxu0 0.0
        %406 = vmatmul.mubr.f32.gmra.mxu0 %v336
        %v407 = vpop.f32.mrf.mxu0
        %v408 = vadd.f32 0.0, %v407
        %v409 = vpop.f32.mrf.mxu0
        %410 = vmatprep.mubr.f32.mxu0 0.0
        %411 = vmatmul.mubr.f32.gmra.mxu0 %v339
        %v412 = vpop.f32.mrf.mxu0
        %v413 = vadd.f32 0.0, %v412
        %v414 = vpop.f32.mrf.mxu0
        %415 = vdwg.mxu0
        %416 = vmatprep.subr.mxu0 0.0
        %417 = vmatpush1.msra.mxu0 %v328
        %418 = vmatprep.subr.mxu0 0.0
        %419 = vmatpush1.msra.mxu0 %v327
        %420 = vmatprep.subr.mxu0 0.0
        %421 = vmatpush1.msra.mxu0 %v326
        %422 = vmatprep.subr.mxu0 0.0
        %423 = vmatpush1.msra.mxu0 %v325
        %424 = vmatprep.subr.mxu0 0.0
        %425 = vmatpush1.msra.mxu0 %v324
        %426 = vmatprep.subr.mxu0 0.0
        %427 = vmatpush1.msra.mxu0 %v323
        %428 = vmatprep.subr.mxu0 0.0
        %429 = vmatpush1.msra.mxu0 %v322
        %430 = vmatprep.subr.mxu0 0.0
        %431 = vmatpush1.msra.mxu0 %v321
        %432 = vmatprep.subr.mxu0 0.0
        %433 = vmatpush1.msra.mxu0 %v320
        %434 = vmatprep.subr.mxu0 0.0
        %435 = vmatpush1.msra.mxu0 %v319
        %436 = vmatprep.subr.mxu0 0.0
        %437 = vmatpush1.msra.mxu0 %v318
        %438 = vmatprep.subr.mxu0 0.0
        %439 = vmatpush1.msra.mxu0 %v317
        %440 = vmatprep.subr.mxu0 0.0
        %441 = vmatpush1.msra.mxu0 %v316
        %442 = vmatprep.subr.mxu0 0.0
        %443 = vmatpush1.msra.mxu0 %v315
        %444 = vmatprep.subr.mxu0 0.0
        %445 = vmatpush1.msra.mxu0 %v314
        %446 = vmatprep.subr.mxu0 0.0
        %447 = vmatpush1.msra.mxu0 %v313
        %448 = vmatprep.subr.mxu0 0.0
        %449 = vmatpush2.msra.mxu0 0.0
        %450 = vmatprep.subr.mxu0 0.0
        %451 = vmatpush2.msra.mxu0 0.0
        %452 = vmatprep.subr.mxu0 0.0
        %453 = vmatpush2.msra.mxu0 0.0
        %454 = vmatprep.subr.mxu0 0.0
        %455 = vmatpush2.msra.mxu0 0.0
        %456 = vmatprep.subr.mxu0 0.0
        %457 = vmatpush2.msra.mxu0 0.0
        %458 = vmatprep.subr.mxu0 0.0
        %459 = vmatpush2.msra.mxu0 0.0
        %460 = vmatprep.subr.mxu0 0.0
        %461 = vmatpush2.msra.mxu0 0.0
        %462 = vmatprep.subr.mxu0 0.0
        %463 = vmatpush2.msra.mxu0 0.0
        %464 = vmatprep.subr.mxu0 0.0
        %465 = vmatpush2.msra.mxu0 0.0
        %466 = vmatprep.subr.mxu0 0.0
        %467 = vmatpush2.msra.mxu0 0.0
        %468 = vmatprep.subr.mxu0 0.0
        %469 = vmatpush2.msra.mxu0 0.0
        %470 = vmatprep.subr.mxu0 0.0
        %471 = vmatpush2.msra.mxu0 0.0
        %472 = vmatprep.subr.mxu0 0.0
        %473 = vmatpush2.msra.mxu0 0.0
        %474 = vmatprep.subr.mxu0 0.0
        %475 = vmatpush2.msra.mxu0 0.0
        %476 = vmatprep.subr.mxu0 0.0
        %477 = vmatpush2.msra.mxu0 0.0
        %478 = vmatprep.subr.mxu0 0.0
        %479 = vmatpush2.msra.mxu0 0.0
        %480 = vmatprep.mubr.f32.mxu0 0.0
        %481 = vmatmul.mubr.f32.gmra.mxu0 %v311
        %v482 = vpop.f32.mrf.mxu0
        %v483 = vadd.f32 %v408, %v482
        %v484 = vpop.f32.mrf.mxu0
        %485 = vmatprep.mubr.f32.mxu0 0.0
        %486 = vmatmul.mubr.f32.gmra.mxu0 %v312
        %v487 = vpop.f32.mrf.mxu0
        %v488 = vadd.f32 %v413, %v487
        %v489 = vpop.f32.mrf.mxu0
        %490 = vdwg.mxu0
        %v492 = vlaneseq
        %v493 = vshrl.u32 %v492, 7
        %v494 = vsub.s32 0, %v493
        %v495 = vrot.slane %v331, %v494
        %v497 = vadd.f32 %v483, %v495
        %v498 = vadd.f32 %v488, %v495
        %500 = vset.pattern.permute.xlu0 0
        %501 = vperm.xlu0 %500, %v332
        %v502 = vpop.permute.xlu0 %501
        %505 = vset.pattern.permute.xlu0 0
        %506 = vperm.xlu0 %505, %v333
        %v507 = vpop.permute.xlu0 %506
        %v509 = vadd.f32 %v497, %v502
        %v510 = vadd.f32 %v498, %v507
        %v511 = vadd.f32 %v509, %v311
        %v512 = vadd.f32 %v510, %v312
        %v513 = vmul.f32 %v511, 0.01
        %v514 = vmul.f32 %v512, 0.01
        %v515 = vmax.f32 %v511, %v513
        %v516 = vmax.f32 %v512, %v514
        %s517 = scalar_lea.vmem %s2, 128
        %v518 = vld [vmem:[%s517] sm:$0xff]
        %v519 = vld [vmem:[%s517 + $0x8] sm:$0xff]
        %v520 = vld [vmem:[%s517 + $0x10] sm:$0xff]
        %v521 = vld [vmem:[%s517 + $0x18] sm:$0xff]
        %v522 = vld [vmem:[%s517 + $0x20] sm:$0xff]
        %v523 = vld [vmem:[%s517 + $0x28] sm:$0xff]
        %v524 = vld [vmem:[%s517 + $0x30] sm:$0xff]
        %v525 = vld [vmem:[%s517 + $0x38] sm:$0xff]
        %v526 = vld [vmem:[%s517 + $0x40] sm:$0xff]
        %v527 = vld [vmem:[%s517 + $0x48] sm:$0xff]
        %v528 = vld [vmem:[%s517 + $0x50] sm:$0xff]
        %v529 = vld [vmem:[%s517 + $0x58] sm:$0xff]
        %v530 = vld [vmem:[%s517 + $0x60] sm:$0xff]
        %v531 = vld [vmem:[%s517 + $0x68] sm:$0xff]
        %v532 = vld [vmem:[%s517 + $0x70] sm:$0xff]
        %v533 = vld [vmem:[%s517 + $0x78] sm:$0xff]
        %s534 = scalar_lea.vmem %s3, 16
        %v535 = vld [vmem:[%s534] sm:$0xff]
        %v536 = vld [vmem:[%s534 + $0x8] sm:$0xff]
        %s537 = scalar_lea.vmem %s4, 1
        %v538 = vld [vmem:[%s537] sm:$0x1]
        %s539 = scalar_lea.vmem %s5, 16
        %v540 = vld [vmem:[%s539] sm:$0xff]
        %v541 = vld [vmem:[%s539 + $0x8] sm:$0xff]
        %v543 = vsel %vm334, %v535, 0
        %v546 = vsel %vm334, %v536, 0
        %548 = vmatprep.subr.mxu0 0.0
        %549 = vmatpush1.msra.mxu0 0.0
        %550 = vmatprep.subr.mxu0 0.0
        %551 = vmatpush1.msra.mxu0 0.0
        %552 = vmatprep.subr.mxu0 0.0
        %553 = vmatpush1.msra.mxu0 0.0
        %554 = vmatprep.subr.mxu0 0.0
        %555 = vmatpush1.msra.mxu0 0.0
        %556 = vmatprep.subr.mxu0 0.0
        %557 = vmatpush1.msra.mxu0 0.0
        %558 = vmatprep.subr.mxu0 0.0
        %559 = vmatpush1.msra.mxu0 0.0
        %560 = vmatprep.subr.mxu0 0.0
        %561 = vmatpush1.msra.mxu0 0.0
        %562 = vmatprep.subr.mxu0 0.0
        %563 = vmatpush1.msra.mxu0 0.0
        %564 = vmatprep.subr.mxu0 0.0
        %565 = vmatpush1.msra.mxu0 0.0
        %566 = vmatprep.subr.mxu0 0.0
        %567 = vmatpush1.msra.mxu0 0.0
        %568 = vmatprep.subr.mxu0 0.0
        %569 = vmatpush1.msra.mxu0 0.0
        %570 = vmatprep.subr.mxu0 0.0
        %571 = vmatpush1.msra.mxu0 0.0
        %572 = vmatprep.subr.mxu0 0.0
        %573 = vmatpush1.msra.mxu0 0.0
        %574 = vmatprep.subr.mxu0 0.0
        %575 = vmatpush1.msra.mxu0 0.0
        %576 = vmatprep.subr.mxu0 0.0
        %577 = vmatpush1.msra.mxu0 %v516
        %578 = vmatprep.subr.mxu0 0.0
        %579 = vmatpush1.msra.mxu0 %v515
        %580 = vmatprep.subr.mxu0 0.0
        %581 = vmatpush2.msra.mxu0 0.0
        %582 = vmatprep.subr.mxu0 0.0
        %583 = vmatpush2.msra.mxu0 0.0
        %584 = vmatprep.subr.mxu0 0.0
        %585 = vmatpush2.msra.mxu0 0.0
        %586 = vmatprep.subr.mxu0 0.0
        %587 = vmatpush2.msra.mxu0 0.0
        %588 = vmatprep.subr.mxu0 0.0
        %589 = vmatpush2.msra.mxu0 0.0
        %590 = vmatprep.subr.mxu0 0.0
        %591 = vmatpush2.msra.mxu0 0.0
        %592 = vmatprep.subr.mxu0 0.0
        %593 = vmatpush2.msra.mxu0 0.0
        %594 = vmatprep.subr.mxu0 0.0
        %595 = vmatpush2.msra.mxu0 0.0
        %596 = vmatprep.subr.mxu0 0.0
        %597 = vmatpush2.msra.mxu0 0.0
        %598 = vmatprep.subr.mxu0 0.0
        %599 = vmatpush2.msra.mxu0 0.0
        %600 = vmatprep.subr.mxu0 0.0
        %601 = vmatpush2.msra.mxu0 0.0
        %602 = vmatprep.subr.mxu0 0.0
        %603 = vmatpush2.msra.mxu0 0.0
        %604 = vmatprep.subr.mxu0 0.0
        %605 = vmatpush2.msra.mxu0 0.0
        %606 = vmatprep.subr.mxu0 0.0
        %607 = vmatpush2.msra.mxu0 0.0
        %608 = vmatprep.subr.mxu0 0.0
        %609 = vmatpush2.msra.mxu0 0.0
        %610 = vmatprep.subr.mxu0 0.0
        %611 = vmatpush2.msra.mxu0 0.0
        %612 = vmatprep.mubr.f32.mxu0 0.0
        %613 = vmatmul.mubr.f32.gmra.mxu0 %v543
        %v614 = vpop.f32.mrf.mxu0
        %v615 = vadd.f32 0.0, %v614
        %v616 = vpop.f32.mrf.mxu0
        %617 = vmatprep.mubr.f32.mxu0 0.0
        %618 = vmatmul.mubr.f32.gmra.mxu0 %v546
        %v619 = vpop.f32.mrf.mxu0
        %v620 = vadd.f32 0.0, %v619
        %v621 = vpop.f32.mrf.mxu0
        %622 = vdwg.mxu0
        %623 = vmatprep.subr.mxu0 0.0
        %624 = vmatpush1.msra.mxu0 %v533
        %625 = vmatprep.subr.mxu0 0.0
        %626 = vmatpush1.msra.mxu0 %v532
        %627 = vmatprep.subr.mxu0 0.0
        %628 = vmatpush1.msra.mxu0 %v531
        %629 = vmatprep.subr.mxu0 0.0
        %630 = vmatpush1.msra.mxu0 %v530
        %631 = vmatprep.subr.mxu0 0.0
        %632 = vmatpush1.msra.mxu0 %v529
        %633 = vmatprep.subr.mxu0 0.0
        %634 = vmatpush1.msra.mxu0 %v528
        %635 = vmatprep.subr.mxu0 0.0
        %636 = vmatpush1.msra.mxu0 %v527
        %637 = vmatprep.subr.mxu0 0.0
        %638 = vmatpush1.msra.mxu0 %v526
        %639 = vmatprep.subr.mxu0 0.0
        %640 = vmatpush1.msra.mxu0 %v525
        %641 = vmatprep.subr.mxu0 0.0
        %642 = vmatpush1.msra.mxu0 %v524
        %643 = vmatprep.subr.mxu0 0.0
        %644 = vmatpush1.msra.mxu0 %v523
        %645 = vmatprep.subr.mxu0 0.0
        %646 = vmatpush1.msra.mxu0 %v522
        %647 = vmatprep.subr.mxu0 0.0
        %648 = vmatpush1.msra.mxu0 %v521
        %649 = vmatprep.subr.mxu0 0.0
        %650 = vmatpush1.msra.mxu0 %v520
        %651 = vmatprep.subr.mxu0 0.0
        %652 = vmatpush1.msra.mxu0 %v519
        %653 = vmatprep.subr.mxu0 0.0
        %654 = vmatpush1.msra.mxu0 %v518
        %655 = vmatprep.subr.mxu0 0.0
        %656 = vmatpush2.msra.mxu0 0.0
        %657 = vmatprep.subr.mxu0 0.0
        %658 = vmatpush2.msra.mxu0 0.0
        %659 = vmatprep.subr.mxu0 0.0
        %660 = vmatpush2.msra.mxu0 0.0
        %661 = vmatprep.subr.mxu0 0.0
        %662 = vmatpush2.msra.mxu0 0.0
        %663 = vmatprep.subr.mxu0 0.0
        %664 = vmatpush2.msra.mxu0 0.0
        %665 = vmatprep.subr.mxu0 0.0
        %666 = vmatpush2.msra.mxu0 0.0
        %667 = vmatprep.subr.mxu0 0.0
        %668 = vmatpush2.msra.mxu0 0.0
        %669 = vmatprep.subr.mxu0 0.0
        %670 = vmatpush2.msra.mxu0 0.0
        %671 = vmatprep.subr.mxu0 0.0
        %672 = vmatpush2.msra.mxu0 0.0
        %673 = vmatprep.subr.mxu0 0.0
        %674 = vmatpush2.msra.mxu0 0.0
        %675 = vmatprep.subr.mxu0 0.0
        %676 = vmatpush2.msra.mxu0 0.0
        %677 = vmatprep.subr.mxu0 0.0
        %678 = vmatpush2.msra.mxu0 0.0
        %679 = vmatprep.subr.mxu0 0.0
        %680 = vmatpush2.msra.mxu0 0.0
        %681 = vmatprep.subr.mxu0 0.0
        %682 = vmatpush2.msra.mxu0 0.0
        %683 = vmatprep.subr.mxu0 0.0
        %684 = vmatpush2.msra.mxu0 0.0
        %685 = vmatprep.subr.mxu0 0.0
        %686 = vmatpush2.msra.mxu0 0.0
        %687 = vmatprep.mubr.f32.mxu0 0.0
        %688 = vmatmul.mubr.f32.gmra.mxu0 %v515
        %v689 = vpop.f32.mrf.mxu0
        %v690 = vadd.f32 %v615, %v689
        %v691 = vpop.f32.mrf.mxu0
        %692 = vmatprep.mubr.f32.mxu0 0.0
        %693 = vmatmul.mubr.f32.gmra.mxu0 %v516
        %v694 = vpop.f32.mrf.mxu0
        %v695 = vadd.f32 %v620, %v694
        %v696 = vpop.f32.mrf.mxu0
        %697 = vdwg.mxu0
        %v699 = vlaneseq
        %v700 = vshrl.u32 %v699, 7
        %v701 = vsub.s32 0, %v700
        %v702 = vrot.slane %v538, %v701
        %v704 = vadd.f32 %v690, %v702
        %v705 = vadd.f32 %v695, %v702
        %707 = vset.pattern.permute.xlu0 0
        %708 = vperm.xlu0 %707, %v540
        %v709 = vpop.permute.xlu0 %708
        %712 = vset.pattern.permute.xlu0 0
        %713 = vperm.xlu0 %712, %v541
        %v714 = vpop.permute.xlu0 %713
        %v716 = vadd.f32 %v704, %v709
        %v717 = vadd.f32 %v705, %v714
        %v718 = vadd.f32 %v716, %v515
        %v719 = vadd.f32 %v717, %v516
        %v720 = vmul.f32 %v718, 0.01
        %v721 = vmul.f32 %v719, 0.01
        %v722 = vmax.f32 %v718, %v720
        %v723 = vmax.f32 %v719, %v721
        %s724 = scalar_lea.vmem %s2, 256
        %v725 = vld [vmem:[%s724] sm:$0xff]
        %v726 = vld [vmem:[%s724 + $0x8] sm:$0xff]
        %v727 = vld [vmem:[%s724 + $0x10] sm:$0xff]
        %v728 = vld [vmem:[%s724 + $0x18] sm:$0xff]
        %v729 = vld [vmem:[%s724 + $0x20] sm:$0xff]
        %v730 = vld [vmem:[%s724 + $0x28] sm:$0xff]
        %v731 = vld [vmem:[%s724 + $0x30] sm:$0xff]
        %v732 = vld [vmem:[%s724 + $0x38] sm:$0xff]
        %v733 = vld [vmem:[%s724 + $0x40] sm:$0xff]
        %v734 = vld [vmem:[%s724 + $0x48] sm:$0xff]
        %v735 = vld [vmem:[%s724 + $0x50] sm:$0xff]
        %v736 = vld [vmem:[%s724 + $0x58] sm:$0xff]
        %v737 = vld [vmem:[%s724 + $0x60] sm:$0xff]
        %v738 = vld [vmem:[%s724 + $0x68] sm:$0xff]
        %v739 = vld [vmem:[%s724 + $0x70] sm:$0xff]
        %v740 = vld [vmem:[%s724 + $0x78] sm:$0xff]
        %s741 = scalar_lea.vmem %s3, 32
        %v742 = vld [vmem:[%s741] sm:$0xff]
        %v743 = vld [vmem:[%s741 + $0x8] sm:$0xff]
        %s744 = scalar_lea.vmem %s4, 2
        %v745 = vld [vmem:[%s744] sm:$0x1]
        %s746 = scalar_lea.vmem %s5, 32
        %v747 = vld [vmem:[%s746] sm:$0xff]
        %v748 = vld [vmem:[%s746 + $0x8] sm:$0xff]
        %v750 = vsel %vm334, %v742, 0
        %v753 = vsel %vm334, %v743, 0
        %755 = vmatprep.subr.mxu0 0.0
        %756 = vmatpush1.msra.mxu0 0.0
        %757 = vmatprep.subr.mxu0 0.0
        %758 = vmatpush1.msra.mxu0 0.0
        %759 = vmatprep.subr.mxu0 0.0
        %760 = vmatpush1.msra.mxu0 0.0
        %761 = vmatprep.subr.mxu0 0.0
        %762 = vmatpush1.msra.mxu0 0.0
        %763 = vmatprep.subr.mxu0 0.0
        %764 = vmatpush1.msra.mxu0 0.0
        %765 = vmatprep.subr.mxu0 0.0
        %766 = vmatpush1.msra.mxu0 0.0
        %767 = vmatprep.subr.mxu0 0.0
        %768 = vmatpush1.msra.mxu0 0.0
        %769 = vmatprep.subr.mxu0 0.0
        %770 = vmatpush1.msra.mxu0 0.0
        %771 = vmatprep.subr.mxu0 0.0
        %772 = vmatpush1.msra.mxu0 0.0
        %773 = vmatprep.subr.mxu0 0.0
        %774 = vmatpush1.msra.mxu0 0.0
        %775 = vmatprep.subr.mxu0 0.0
        %776 = vmatpush1.msra.mxu0 0.0
        %777 = vmatprep.subr.mxu0 0.0
        %778 = vmatpush1.msra.mxu0 0.0
        %779 = vmatprep.subr.mxu0 0.0
        %780 = vmatpush1.msra.mxu0 0.0
        %781 = vmatprep.subr.mxu0 0.0
        %782 = vmatpush1.msra.mxu0 0.0
        %783 = vmatprep.subr.mxu0 0.0
        %784 = vmatpush1.msra.mxu0 %v723
        %785 = vmatprep.subr.mxu0 0.0
        %786 = vmatpush1.msra.mxu0 %v722
        %787 = vmatprep.subr.mxu0 0.0
        %788 = vmatpush2.msra.mxu0 0.0
        %789 = vmatprep.subr.mxu0 0.0
        %790 = vmatpush2.msra.mxu0 0.0
        %791 = vmatprep.subr.mxu0 0.0
        %792 = vmatpush2.msra.mxu0 0.0
        %793 = vmatprep.subr.mxu0 0.0
        %794 = vmatpush2.msra.mxu0 0.0
        %795 = vmatprep.subr.mxu0 0.0
        %796 = vmatpush2.msra.mxu0 0.0
        %797 = vmatprep.subr.mxu0 0.0
        %798 = vmatpush2.msra.mxu0 0.0
        %799 = vmatprep.subr.mxu0 0.0
        %800 = vmatpush2.msra.mxu0 0.0
        %801 = vmatprep.subr.mxu0 0.0
        %802 = vmatpush2.msra.mxu0 0.0
        %803 = vmatprep.subr.mxu0 0.0
        %804 = vmatpush2.msra.mxu0 0.0
        %805 = vmatprep.subr.mxu0 0.0
        %806 = vmatpush2.msra.mxu0 0.0
        %807 = vmatprep.subr.mxu0 0.0
        %808 = vmatpush2.msra.mxu0 0.0
        %809 = vmatprep.subr.mxu0 0.0
        %810 = vmatpush2.msra.mxu0 0.0
        %811 = vmatprep.subr.mxu0 0.0
        %812 = vmatpush2.msra.mxu0 0.0
        %813 = vmatprep.subr.mxu0 0.0
        %814 = vmatpush2.msra.mxu0 0.0
        %815 = vmatprep.subr.mxu0 0.0
        %816 = vmatpush2.msra.mxu0 0.0
        %817 = vmatprep.subr.mxu0 0.0
        %818 = vmatpush2.msra.mxu0 0.0
        %819 = vmatprep.mubr.f32.mxu0 0.0
        %820 = vmatmul.mubr.f32.gmra.mxu0 %v750
        %v821 = vpop.f32.mrf.mxu0
        %v822 = vadd.f32 0.0, %v821
        %v823 = vpop.f32.mrf.mxu0
        %824 = vmatprep.mubr.f32.mxu0 0.0
        %825 = vmatmul.mubr.f32.gmra.mxu0 %v753
        %v826 = vpop.f32.mrf.mxu0
        %v827 = vadd.f32 0.0, %v826
        %v828 = vpop.f32.mrf.mxu0
        %829 = vdwg.mxu0
        %830 = vmatprep.subr.mxu0 0.0
        %831 = vmatpush1.msra.mxu0 %v740
        %832 = vmatprep.subr.mxu0 0.0
        %833 = vmatpush1.msra.mxu0 %v739
        %834 = vmatprep.subr.mxu0 0.0
        %835 = vmatpush1.msra.mxu0 %v738
        %836 = vmatprep.subr.mxu0 0.0
        %837 = vmatpush1.msra.mxu0 %v737
        %838 = vmatprep.subr.mxu0 0.0
        %839 = vmatpush1.msra.mxu0 %v736
        %840 = vmatprep.subr.mxu0 0.0
        %841 = vmatpush1.msra.mxu0 %v735
        %842 = vmatprep.subr.mxu0 0.0
        %843 = vmatpush1.msra.mxu0 %v734
        %844 = vmatprep.subr.mxu0 0.0
        %845 = vmatpush1.msra.mxu0 %v733
        %846 = vmatprep.subr.mxu0 0.0
        %847 = vmatpush1.msra.mxu0 %v732
        %848 = vmatprep.subr.mxu0 0.0
        %849 = vmatpush1.msra.mxu0 %v731
        %850 = vmatprep.subr.mxu0 0.0
        %851 = vmatpush1.msra.mxu0 %v730
        %852 = vmatprep.subr.mxu0 0.0
        %853 = vmatpush1.msra.mxu0 %v729
        %854 = vmatprep.subr.mxu0 0.0
        %855 = vmatpush1.msra.mxu0 %v728
        %856 = vmatprep.subr.mxu0 0.0
        %857 = vmatpush1.msra.mxu0 %v727
        %858 = vmatprep.subr.mxu0 0.0
        %859 = vmatpush1.msra.mxu0 %v726
        %860 = vmatprep.subr.mxu0 0.0
        %861 = vmatpush1.msra.mxu0 %v725
        %862 = vmatprep.subr.mxu0 0.0
        %863 = vmatpush2.msra.mxu0 0.0
        %864 = vmatprep.subr.mxu0 0.0
        %865 = vmatpush2.msra.mxu0 0.0
        %866 = vmatprep.subr.mxu0 0.0
        %867 = vmatpush2.msra.mxu0 0.0
        %868 = vmatprep.subr.mxu0 0.0
        %869 = vmatpush2.msra.mxu0 0.0
        %870 = vmatprep.subr.mxu0 0.0
        %871 = vmatpush2.msra.mxu0 0.0
        %872 = vmatprep.subr.mxu0 0.0
        %873 = vmatpush2.msra.mxu0 0.0
        %874 = vmatprep.subr.mxu0 0.0
        %875 = vmatpush2.msra.mxu0 0.0
        %876 = vmatprep.subr.mxu0 0.0
        %877 = vmatpush2.msra.mxu0 0.0
        %878 = vmatprep.subr.mxu0 0.0
        %879 = vmatpush2.msra.mxu0 0.0
        %880 = vmatprep.subr.mxu0 0.0
        %881 = vmatpush2.msra.mxu0 0.0
        %882 = vmatprep.subr.mxu0 0.0
        %883 = vmatpush2.msra.mxu0 0.0
        %884 = vmatprep.subr.mxu0 0.0
        %885 = vmatpush2.msra.mxu0 0.0
        %886 = vmatprep.subr.mxu0 0.0
        %887 = vmatpush2.msra.mxu0 0.0
        %888 = vmatprep.subr.mxu0 0.0
        %889 = vmatpush2.msra.mxu0 0.0
        %890 = vmatprep.subr.mxu0 0.0
        %891 = vmatpush2.msra.mxu0 0.0
        %892 = vmatprep.subr.mxu0 0.0
        %893 = vmatpush2.msra.mxu0 0.0
        %894 = vmatprep.mubr.f32.mxu0 0.0
        %895 = vmatmul.mubr.f32.gmra.mxu0 %v722
        %v896 = vpop.f32.mrf.mxu0
        %v897 = vadd.f32 %v822, %v896
        %v898 = vpop.f32.mrf.mxu0
        %899 = vmatprep.mubr.f32.mxu0 0.0
        %900 = vmatmul.mubr.f32.gmra.mxu0 %v723
        %v901 = vpop.f32.mrf.mxu0
        %v902 = vadd.f32 %v827, %v901
        %v903 = vpop.f32.mrf.mxu0
        %904 = vdwg.mxu0
        %v906 = vlaneseq
        %v907 = vshrl.u32 %v906, 7
        %v908 = vsub.s32 0, %v907
        %v909 = vrot.slane %v745, %v908
        %v911 = vadd.f32 %v897, %v909
        %v912 = vadd.f32 %v902, %v909
        %914 = vset.pattern.permute.xlu0 0
        %915 = vperm.xlu0 %914, %v747
        %v916 = vpop.permute.xlu0 %915
        %919 = vset.pattern.permute.xlu0 0
        %920 = vperm.xlu0 %919, %v748
        %v921 = vpop.permute.xlu0 %920
        %v923 = vadd.f32 %v911, %v916
        %v924 = vadd.f32 %v912, %v921
        %v925 = vadd.f32 %v923, %v722
        %v926 = vadd.f32 %v924, %v723
        %v927 = vmul.f32 %v925, 0.01
        %v928 = vmul.f32 %v926, 0.01
        %v929 = vmax.f32 %v925, %v927
        %v930 = vmax.f32 %v926, %v928
        %931 = vst [vmem:[%s298] sm:$0xff] %v929
        %932 = vst [vmem:[%s298 + $0x8] sm:$0xff] %v930
        %s933 = sand.u32 %s157, 1
        %s934 = sand.u32 %s157, 1
        %s935 = smul.addr %s934, 16
        %s936 = scalar_lea.vmem [#allocation5], %s935
        // Predicated region
        $region87: #{generative_forward.1} parent=77 // pred_check
          %p937 = pneg %p167
        $region88: #{generative_forward.1} parent=77 // pred_check_branch
          %939 = sbr.rel (%p937) target = $region90
        $region89: #{generative_forward.1} parent=77 // pred_region
          %s940 = smul.addr %s18, 8
          %s941 = scalar_lea.vmem %s6, %s940
          // Predicated region
          $region91: #{generative_forward.1} parent=89 // pred_check
            _
          $region92: #{generative_forward.1} parent=89 // pred_check_branch
            %943 = sbr.rel (0) target = $region94
          $region93: #{generative_forward.1} parent=89 // pred_region
            // Predicated region
            $region95: #{generative_forward.1} parent=93 // pred_check
              _
            $region96: #{generative_forward.1} parent=93 // pred_check_branch
              %945 = sbr.rel (0) target = $region98
            $region97: #{generative_forward.1} parent=93 // pred_region
              // Predicated region
              $region110: #{generative_forward.1} parent=97 // pred_check
                _
              $region111: #{generative_forward.1} parent=97 // pred_check_branch
                %963 = sbr.rel (0) target = $region113
              $region112: #{generative_forward.1} parent=97 // pred_region
                loop: start=0, step=1, limit=1
                $region114: #{generative_forward.1} parent=112 // loop_pre_header
                  _
                $region115: #{generative_forward.1} parent=112 // loop_header
                  %s965 = sphi 0, %s969
                  %p966 = scmp.ge.s32.totalorder %s965, 1
                  %s970 = sphi %s936, %s936
                  %s971 = sphi %s941, %s941
                $region116: #{generative_forward.1} parent=112 // loop_header_branch
                  %968 = sbr.rel (%p966) target = $region120
                $region117: #{generative_forward.1} parent=112 // loop_body
                  %v972 = vld [vmem:[%s970] sm:$0xff]
                  %973 = vst [vmem:[%s971] sm:$0xff] %v972
                  %v974 = vld [vmem:[%s970 + $0x8] sm:$0xff]
                  %975 = vst [vmem:[%s971 + $0x10] sm:$0xff] %v974
                $region118: #{generative_forward.1} parent=112 // loop_footer
                  %s969 = sadd.s32 1, %s965
                $region119: #{generative_forward.1} parent=112 // loop_footer_branch
                  %964 = sbr.rel target = $region115
                $region120: #{generative_forward.1} parent=112 // loop_exit
                  _
              $region113: #{generative_forward.1} parent=97 // pred_fallthru
                _
              // Predicated region
              $region121: #{generative_forward.1} parent=97 // pred_check
                _
              $region122: #{generative_forward.1} parent=97 // pred_check_branch
                %977 = sbr.rel target = $region124
              $region123: #{generative_forward.1} parent=97 // pred_region
                _
              $region124: #{generative_forward.1} parent=97 // pred_fallthru
                _
            $region98: #{generative_forward.1} parent=93 // pred_fallthru
              _
            // Predicated region
            $region99: #{generative_forward.1} parent=93 // pred_check
              _
            $region100: #{generative_forward.1} parent=93 // pred_check_branch
              %947 = sbr.rel target = $region102
            $region101: #{generative_forward.1} parent=93 // pred_region
              %s949 = ssub.s32 256, 1
              loop: start=0, step=1, limit=1
              $region103: #{generative_forward.1} parent=101 // loop_pre_header
                _
              $region104: #{generative_forward.1} parent=101 // loop_header
                %s951 = sphi 0, %s955
                %p952 = scmp.ge.s32.totalorder %s951, 1
                %s956 = sphi %s936, %s936
                %s957 = sphi %s941, %s941
              $region105: #{generative_forward.1} parent=101 // loop_header_branch
                %954 = sbr.rel (%p952) target = $region109
              $region106: #{generative_forward.1} parent=101 // loop_body
                %v958 = vld [vmem:[%s956] sm:%s949]
                %959 = vst [vmem:[%s957] sm:%s949] %v958
                %v960 = vld [vmem:[%s956 + $0x8] sm:%s949]
                %961 = vst [vmem:[%s957 + $0x10] sm:%s949] %v960
              $region107: #{generative_forward.1} parent=101 // loop_footer
                %s955 = sadd.s32 1, %s951
              $region108: #{generative_forward.1} parent=101 // loop_footer_branch
                %950 = sbr.rel target = $region104
              $region109: #{generative_forward.1} parent=101 // loop_exit
                _
            $region102: #{generative_forward.1} parent=93 // pred_fallthru
              _
          $region94: #{generative_forward.1} parent=89 // pred_fallthru
            _
          %978 = vnop
        $region90: #{generative_forward.1} parent=77 // pred_fallthru
          _
      $region78: #{generative_forward.1} parent=5 // pred_fallthru
        _
      %p979 = scmp.le.s32.totalorder 2, %s13
      // Predicated region
      $region125: #{generative_forward.1} parent=5 // pred_check
        %p980 = pneg %p979
      $region126: #{generative_forward.1} parent=5 // pred_check_branch
        %982 = sbr.rel (%p980) target = $region128
      $region127: #{generative_forward.1} parent=5 // pred_region
        %s983 = ssub.s32 %s13, 2
        // Predicated region
        $region129: #{generative_forward.1} parent=127 // pred_check
          %p984 = pneg %p173
        $region130: #{generative_forward.1} parent=127 // pred_check_branch
          %986 = sbr.rel (%p984) target = $region132
        $region131: #{generative_forward.1} parent=127 // pred_region
          %s987 = sand.u32 %s158, 1
          %s988 = sand.u32 %s158, 1
          %s989 = smul.addr %s988, 16
          %s990 = scalar_lea.vmem [#allocation5], %s989
        $region132: #{generative_forward.1} parent=127 // pred_fallthru
          _
      $region128: #{generative_forward.1} parent=5 // pred_fallthru
        _
    $region6: #{generative_forward.1} parent=1 // loop_footer
      %s17 = sadd.s32 1, %s13
    $region7: #{generative_forward.1} parent=1 // loop_footer_branch
      %12 = sbr.rel target = $region3
    $region8: #{generative_forward.1} parent=1 // loop_exit
      _
    %991 = vsyncpa [#allocation3], 1
    %s992 = scalar_lea.sflag [#allocation3], 1
    %993 = vsyncpa %s992, 1

// kernel: generative_forward.1
$region0: #{generative_forward.1}
  #allocation0 [shape = 'u32[]', space=smem, size = 0x4, offset = 0x4, fixed_abs, tag = 'smem constant byte address 0x4 - core index']
  #allocation1 [shape = 'u32[144,128]{1,0:T(1,128)}', space=vmem, size = 0x12000, scoped, tag = 'internal scratch']
  %s0 = inlined_call_operand.vmem [shape: f32[3], index: 0, kind: input, shape index: {}]
  %s1 = inlined_call_operand.vmem [shape: f32[16,256], index: 1, kind: input, shape index: {}]
  %s2 = inlined_call_operand.vmem [shape: f32[3,128,128], index: 2, kind: input, shape index: {}]
  %s3 = inlined_call_operand.vmem [shape: f32[3,16,16], index: 3, kind: input, shape index: {}]
  %s4 = inlined_call_operand.vmem [shape: f32[3,1,128], index: 4, kind: input, shape index: {}]
  %s5 = inlined_call_operand.vmem [shape: f32[3,16,1], index: 5, kind: input, shape index: {}]
  %s6 = inlined_call_operand.vmem [shape: f32[16,256], index: 6, kind: output, shape index: {}]
  %s7 = sld [smem:[#allocation0]]
  $region133: #{generative_forward.1} parent=0
    _
  %s9 = ssub.s32 1, %s7
  %s10 = scalar_select 0, %s9, %s7
  $region1: #{generative_forward.1} parent=0
    #allocation2 [shape = 'u8[512]{0}', space=smem, size = 0x200, scoped, tag = 'input window, operand 0, single buffered']
    #allocation3 [shape = 's32[2]{0}', space=sflag, size = 0x8, scoped, tag = 'scoped memory for generative_forward.1']
    #allocation4 [shape = 'u8[16384]{0}', space=vmem, size = 0x4000, scoped, tag = 'input window, operand 1']
    #allocation5 [shape = 'u8[16384]{0}', space=vmem, size = 0x4000, scoped, tag = 'output window, operand 0']
    %11 = vsyncpa [#allocation3], 0
    loop: start=0, step=1, limit=4
    $region2: #{generative_forward.1} parent=1 // loop_pre_header
      _
    $region3: #{generative_forward.1} parent=1 // loop_header
      %s13 = sphi 0, %s17
      %p14 = scmp.ge.s32.totalorder %s13, 4
      %s21 = sphi 0, %s21
      %s23 = sphi 0, %s21
      %s24 = sphi 0, %s23
      %s38 = sphi 0, %s24
      %s44 = sphi 0, %s46
      %s47 = sphi 0, %s44
      %s48 = sphi 0, %s47
      %s64 = sphi 0, %s48
      %s68 = sphi 0, %s68
      %s70 = sphi 0, %s68
      %s71 = sphi 0, %s70
      %s85 = sphi 0, %s71
      %s89 = sphi 0, %s89
      %s91 = sphi 0, %s89
      %s92 = sphi 0, %s91
      %s106 = sphi 0, %s92
      %s110 = sphi 0, %s110
      %s112 = sphi 0, %s110
      %s113 = sphi 0, %s112
      %s127 = sphi 0, %s113
      %s131 = sphi 0, %s131
      %s133 = sphi 0, %s131
      %s134 = sphi 0, %s133
      %s148 = sphi 0, %s134
      %s154 = sphi 0, %s156
      %s157 = sphi 0, %s154
      %s158 = sphi 0, %s157
      %s174 = sphi 0, %s158
    $region4: #{generative_forward.1} parent=1 // loop_header_branch
      %16 = sbr.rel (%p14) target = $region8
    $region5: #{generative_forward.1} parent=1 // loop_body
      %s18 = ssub.s32 %s13, 1
      %s19 = ssub.s32 %s13, 2
      %s20 = sadd.s32 %s13, 1
      %s22 = sadd.s32 %s21, 1
      %p25 = scmp.eq.s32.totalorder %s13, 1
      %p26 = scmp.ne.s32.totalorder %s21, %s23
      %p27 = scmp.eq.s32.totalorder %s13, 0
      %p28 = por %p26, %p27
      %p29 = scmp.ne.s32.totalorder %s21, %s23
      %p30 = scmp.eq.s32.totalorder %s18, 1
      %p31 = por %p29, %p30
      %p32 = scmp.ne.s32.totalorder %s23, %s24
      %p33 = scmp.eq.s32.totalorder %s18, 0
      %p34 = por %p32, %p33
      %p35 = scmp.ne.s32.totalorder %s23, %s24
      %p36 = scmp.eq.s32.totalorder %s19, 1
      %p37 = por %p35, %p36
      %p39 = scmp.ne.s32.totalorder %s24, %s38
      %p40 = scmp.eq.s32.totalorder %s19, 0
      %p41 = por %p39, %p40
      %s42 = ssub.s32 %s13, %s20
      %p43 = scmp.eq.s32.totalorder %s42, 0
      %s45 = sadd.s32 %s44, 1
      %s46 = scalar_select %p43, %s44, %s45
      %p49 = pneg %p43
      %p50 = scmp.eq.s32.totalorder %s13, 1
      %p51 = por %p49, %p50
      %p52 = scmp.ne.s32.totalorder %s44, %s47
      %p53 = scmp.eq.s32.totalorder %s13, 0
      %p54 = por %p52, %p53
      %p55 = scmp.ne.s32.totalorder %s44, %s47
      %p56 = scmp.eq.s32.totalorder %s18, 1
      %p57 = por %p55, %p56
      %p58 = scmp.ne.s32.totalorder %s47, %s48
      %p59 = scmp.eq.s32.totalorder %s18, 0
      %p60 = por %p58, %p59
      %p61 = scmp.ne.s32.totalorder %s47, %s48
      %p62 = scmp.eq.s32.totalorder %s19, 1
      %p63 = por %p61, %p62
      %p65 = scmp.ne.s32.totalorder %s48, %s64
      %p66 = scmp.eq.s32.totalorder %s19, 0
      %p67 = por %p65, %p66
      %s69 = sadd.s32 %s68, 1
      %p72 = scmp.eq.s32.totalorder %s13, 1
      %p73 = scmp.ne.s32.totalorder %s68, %s70
      %p74 = scmp.eq.s32.totalorder %s13, 0
      %p75 = por %p73, %p74
      %p76 = scmp.ne.s32.totalorder %s68, %s70
      %p77 = scmp.eq.s32.totalorder %s18, 1
      %p78 = por %p76, %p77
      %p79 = scmp.ne.s32.totalorder %s70, %s71
      %p80 = scmp.eq.s32.totalorder %s18, 0
      %p81 = por %p79, %p80
      %p82 = scmp.ne.s32.totalorder %s70, %s71
      %p83 = scmp.eq.s32.totalorder %s19, 1
      %p84 = por %p82, %p83
      %p86 = scmp.ne.s32.totalorder %s71, %s85
      %p87 = scmp.eq.s32.totalorder %s19, 0
      %p88 = por %p86, %p87
      %s90 = sadd.s32 %s89, 1
      %p93 = scmp.eq.s32.totalorder %s13, 1
      %p94 = scmp.ne.s32.totalorder %s89, %s91
      %p95 = scmp.eq.s32.totalorder %s13, 0
      %p96 = por %p94, %p95
      %p97 = scmp.ne.s32.totalorder %s89, %s91
      %p98 = scmp.eq.s32.totalorder %s18, 1
      %p99 = por %p97, %p98
      %p100 = scmp.ne.s32.totalorder %s91, %s92
      %p101 = scmp.eq.s32.totalorder %s18, 0
      %p102 = por %p100, %p101
      %p103 = scmp.ne.s32.totalorder %s91, %s92
      %p104 = scmp.eq.s32.totalorder %s19, 1
      %p105 = por %p103, %p104
      %p107 = scmp.ne.s32.totalorder %s92, %s106
      %p108 = scmp.eq.s32.totalorder %s19, 0
      %p109 = por %p107, %p108
      %s111 = sadd.s32 %s110, 1
      %p114 = scmp.eq.s32.totalorder %s13, 1
      %p115 = scmp.ne.s32.totalorder %s110, %s112
      %p116 = scmp.eq.s32.totalorder %s13, 0
      %p117 = por %p115, %p116
      %p118 = scmp.ne.s32.totalorder %s110, %s112
      %p119 = scmp.eq.s32.totalorder %s18, 1
      %p120 = por %p118, %p119
      %p121 = scmp.ne.s32.totalorder %s112, %s113
      %p122 = scmp.eq.s32.totalorder %s18, 0
      %p123 = por %p121, %p122
      %p124 = scmp.ne.s32.totalorder %s112, %s113
      %p125 = scmp.eq.s32.totalorder %s19, 1
      %p126 = por %p124, %p125
      %p128 = scmp.ne.s32.totalorder %s113, %s127
      %p129 = scmp.eq.s32.totalorder %s19, 0
      %p130 = por %p128, %p129
      %s132 = sadd.s32 %s131, 1
      %p135 = scmp.eq.s32.totalorder %s13, 1
      %p136 = scmp.ne.s32.totalorder %s131, %s133
      %p137 = scmp.eq.s32.totalorder %s13, 0
      %p138 = por %p136, %p137
      %p139 = scmp.ne.s32.totalorder %s131, %s133
      %p140 = scmp.eq.s32.totalorder %s18, 1
      %p141 = por %p139, %p140
      %p142 = scmp.ne.s32.totalorder %s133, %s134
      %p143 = scmp.eq.s32.totalorder %s18, 0
      %p144 = por %p142, %p143
      %p145 = scmp.ne.s32.totalorder %s133, %s134
      %p146 = scmp.eq.s32.totalorder %s19, 1
      %p147 = por %p145, %p146
      %p149 = scmp.ne.s32.totalorder %s134, %s148
      %p150 = scmp.eq.s32.totalorder %s19, 0
      %p151 = por %p149, %p150
      %s152 = ssub.s32 %s13, %s20
      %p153 = scmp.eq.s32.totalorder %s152, 0
      %s155 = sadd.s32 %s154, 1
      %s156 = scalar_select %p153, %s154, %s155
      %p159 = pneg %p153
      %p160 = scmp.eq.s32.totalorder %s13, 1
      %p161 = por %p159, %p160
      %p162 = scmp.ne.s32.totalorder %s154, %s157
      %p163 = scmp.eq.s32.totalorder %s13, 0
      %p164 = por %p162, %p163
      %p165 = scmp.ne.s32.totalorder %s154, %s157
      %p166 = scmp.eq.s32.totalorder %s18, 1
      %p167 = por %p165, %p166
      %p168 = scmp.ne.s32.totalorder %s157, %s158
      %p169 = scmp.eq.s32.totalorder %s18, 0
      %p170 = por %p168, %p169
      %p171 = scmp.ne.s32.totalorder %s157, %s158
      %p172 = scmp.eq.s32.totalorder %s19, 1
      %p173 = por %p171, %p172
      %p175 = scmp.ne.s32.totalorder %s158, %s174
      %p176 = scmp.eq.s32.totalorder %s19, 0
      %p177 = por %p175, %p176
      %p178 = scmp.le.s32.totalorder 1, %s13
      %p179 = scmp.lt.s32.totalorder %s13, 3
      %p180 = pnand %p178, %p179
      %p181 = pneg %p180
      // Predicated region
      $region9: #{generative_forward.1} parent=5 // pred_check
        _
      $region10: #{generative_forward.1} parent=5 // pred_check_branch
        %183 = sbr.rel (%p180) target = $region12
      $region11: #{generative_forward.1} parent=5 // pred_region
        %s184 = ssub.s32 %s13, 1
        // Predicated region
        $region13: #{generative_forward.1} parent=11 // pred_check
          %p185 = pneg %p34
        $region14: #{generative_forward.1} parent=11 // pred_check_branch
          %187 = sbr.rel (%p185) target = $region16
        $region15: #{generative_forward.1} parent=11 // pred_region
          %s189 = ssub.s32 16, 16
          %190 = vsyncadd [#allocation3], %s189
          %s192 = sshll.u32 %s0, 4
          %s193 = int_to_ptr.vmem [resolvable:$true] %s192
          %195 = dma.vmem_to_smem %s193, 16, [#allocation2], [#allocation3]
        $region16: #{generative_forward.1} parent=11 // pred_fallthru
          _
        // Predicated region
        $region17: #{generative_forward.1} parent=11 // pred_check
          %p196 = pneg %p81
        $region18: #{generative_forward.1} parent=11 // pred_check_branch
          %198 = sbr.rel (%p196) target = $region20
        $region19: #{generative_forward.1} parent=11 // pred_region
          _
        $region20: #{generative_forward.1} parent=11 // pred_fallthru
          _
        // Predicated region
        $region21: #{generative_forward.1} parent=11 // pred_check
          %p199 = pneg %p102
        $region22: #{generative_forward.1} parent=11 // pred_check_branch
          %201 = sbr.rel (%p199) target = $region24
        $region23: #{generative_forward.1} parent=11 // pred_region
          _
        $region24: #{generative_forward.1} parent=11 // pred_fallthru
          _
        // Predicated region
        $region25: #{generative_forward.1} parent=11 // pred_check
          %p202 = pneg %p123
        $region26: #{generative_forward.1} parent=11 // pred_check_branch
          %204 = sbr.rel (%p202) target = $region28
        $region27: #{generative_forward.1} parent=11 // pred_region
          _
        $region28: #{generative_forward.1} parent=11 // pred_fallthru
          _
        // Predicated region
        $region29: #{generative_forward.1} parent=11 // pred_check
          %p205 = pneg %p144
        $region30: #{generative_forward.1} parent=11 // pred_check_branch
          %207 = sbr.rel (%p205) target = $region32
        $region31: #{generative_forward.1} parent=11 // pred_region
          _
        $region32: #{generative_forward.1} parent=11 // pred_fallthru
          _
      $region12: #{generative_forward.1} parent=5 // pred_fallthru
        _
      %p208 = scmp.lt.s32.totalorder %s13, 2
      // Predicated region
      $region33: #{generative_forward.1} parent=5 // pred_check
        %p209 = pneg %p208
      $region34: #{generative_forward.1} parent=5 // pred_check_branch
        %211 = sbr.rel (%p209) target = $region36
      $region35: #{generative_forward.1} parent=5 // pred_region
        // Predicated region
        $region37: #{generative_forward.1} parent=35 // pred_check
          %p212 = pneg %p54
        $region38: #{generative_forward.1} parent=35 // pred_check_branch
          %214 = sbr.rel (%p212) target = $region40
        $region39: #{generative_forward.1} parent=35 // pred_region
          %s215 = sand.u32 %s44, 1
          %s216 = sand.u32 %s44, 1
          %s217 = smul.addr %s216, 16
          %s218 = scalar_lea.vmem [#allocation4], %s217
          %s219 = smul.addr %s13, 8
          %s220 = scalar_lea.vmem %s1, %s219
          // Predicated region
          $region41: #{generative_forward.1} parent=39 // pred_check
            _
          $region42: #{generative_forward.1} parent=39 // pred_check_branch
            %222 = sbr.rel (0) target = $region44
          $region43: #{generative_forward.1} parent=39 // pred_region
            // Predicated region
            $region45: #{generative_forward.1} parent=43 // pred_check
              _
            $region46: #{generative_forward.1} parent=43 // pred_check_branch
              %224 = sbr.rel (0) target = $region48
            $region47: #{generative_forward.1} parent=43 // pred_region
              // Predicated region
              $region60: #{generative_forward.1} parent=47 // pred_check
                _
              $region61: #{generative_forward.1} parent=47 // pred_check_branch
                %242 = sbr.rel (0) target = $region63
              $region62: #{generative_forward.1} parent=47 // pred_region
                loop: start=0, step=1, limit=1
                $region64: #{generative_forward.1} parent=62 // loop_pre_header
                  _
                $region65: #{generative_forward.1} parent=62 // loop_header
                  %s244 = sphi 0, %s248
                  %p245 = scmp.ge.s32.totalorder %s244, 1
                  %s249 = sphi %s220, %s220
                  %s250 = sphi %s218, %s218
                $region66: #{generative_forward.1} parent=62 // loop_header_branch
                  %247 = sbr.rel (%p245) target = $region70
                $region67: #{generative_forward.1} parent=62 // loop_body
                  %v251 = vld [vmem:[%s249] sm:$0xff]
                  %252 = vst [vmem:[%s250] sm:$0xff] %v251
                  %v253 = vld [vmem:[%s249 + $0x10] sm:$0xff]
                  %254 = vst [vmem:[%s250 + $0x8] sm:$0xff] %v253
                $region68: #{generative_forward.1} parent=62 // loop_footer
                  %s248 = sadd.s32 1, %s244
                $region69: #{generative_forward.1} parent=62 // loop_footer_branch
                  %243 = sbr.rel target = $region65
                $region70: #{generative_forward.1} parent=62 // loop_exit
                  _
              $region63: #{generative_forward.1} parent=47 // pred_fallthru
                _
              // Predicated region
              $region71: #{generative_forward.1} parent=47 // pred_check
                _
              $region72: #{generative_forward.1} parent=47 // pred_check_branch
                %256 = sbr.rel target = $region74
              $region73: #{generative_forward.1} parent=47 // pred_region
                _
              $region74: #{generative_forward.1} parent=47 // pred_fallthru
                _
            $region48: #{generative_forward.1} parent=43 // pred_fallthru
              _
            // Predicated region
            $region49: #{generative_forward.1} parent=43 // pred_check
              _
            $region50: #{generative_forward.1} parent=43 // pred_check_branch
              %226 = sbr.rel target = $region52
            $region51: #{generative_forward.1} parent=43 // pred_region
              %s228 = ssub.s32 256, 1
              loop: start=0, step=1, limit=1
              $region53: #{generative_forward.1} parent=51 // loop_pre_header
                _
              $region54: #{generative_forward.1} parent=51 // loop_header
                %s230 = sphi 0, %s234
                %p231 = scmp.ge.s32.totalorder %s230, 1
                %s235 = sphi %s220, %s220
                %s236 = sphi %s218, %s218
              $region55: #{generative_forward.1} parent=51 // loop_header_branch
                %233 = sbr.rel (%p231) target = $region59
              $region56: #{generative_forward.1} parent=51 // loop_body
                %v237 = vld [vmem:[%s235] sm:%s228]
                %238 = vst [vmem:[%s236] sm:%s228] %v237
                %v239 = vld [vmem:[%s235 + $0x10] sm:%s228]
                %240 = vst [vmem:[%s236 + $0x8] sm:%s228] %v239
              $region57: #{generative_forward.1} parent=51 // loop_footer
                %s234 = sadd.s32 1, %s230
              $region58: #{generative_forward.1} parent=51 // loop_footer_branch
                %229 = sbr.rel target = $region54
              $region59: #{generative_forward.1} parent=51 // loop_exit
                _
            $region52: #{generative_forward.1} parent=43 // pred_fallthru
              _
          $region44: #{generative_forward.1} parent=39 // pred_fallthru
            _
          %257 = vnop
        $region40: #{generative_forward.1} parent=35 // pred_fallthru
          _
      $region36: #{generative_forward.1} parent=5 // pred_fallthru
        _
      %p258 = scmp.le.s32.totalorder 1, %s13
      %p259 = scmp.lt.s32.totalorder %s13, 3
      %p260 = pnand %p258, %p259
      %p261 = pneg %p260
      // Predicated region
      $region75: #{generative_forward.1} parent=5 // pred_check
        _
      $region76: #{generative_forward.1} parent=5 // pred_check_branch
        %263 = sbr.rel (%p260) target = $region78
      $region77: #{generative_forward.1} parent=5 // pred_region
        %s264 = ssub.s32 %s13, 1
        // Predicated region
        $region79: #{generative_forward.1} parent=77 // pred_check
          %p265 = pneg %p34
        $region80: #{generative_forward.1} parent=77 // pred_check_branch
          %267 = sbr.rel (%p265) target = $region82
        $region81: #{generative_forward.1} parent=77 // pred_region
          %268 = dma.done [#allocation3], 16
        $region82: #{generative_forward.1} parent=77 // pred_fallthru
          _
        %s269 = sand.u32 %s47, 1
        %s270 = sand.u32 %s47, 1
        %s271 = smul.addr %s270, 16
        %s272 = scalar_lea.vmem [#allocation4], %s271
        // Predicated region
        $region83: #{generative_forward.1} parent=77 // pred_check
          %p273 = pneg %p60
        $region84: #{generative_forward.1} parent=77 // pred_check_branch
          %275 = sbr.rel (%p273) target = $region86
        $region85: #{generative_forward.1} parent=77 // pred_region
          _
        $region86: #{generative_forward.1} parent=77 // pred_fallthru
          _
        %276 = sfence
        %p277 = pneg %p34
        %p278 = pneg %p31
        %s279 = sand.u32 %s47, 1
        %s280 = sand.u32 %s47, 1
        %s281 = smul.addr %s280, 16
        %s282 = scalar_lea.vmem [#allocation4], %s281
        %p283 = pneg %p60
        %p284 = pneg %p57
        %p285 = pneg %p81
        %p286 = pneg %p78
        %p287 = pneg %p102
        %p288 = pneg %p99
        %p289 = pneg %p123
        %p290 = pneg %p120
        %p291 = pneg %p144
        %p292 = pneg %p141
        %p293 = pneg %p170
        %p294 = pneg %p167
        %s295 = sand.u32 %s157, 1
        %s296 = sand.u32 %s157, 1
        %s297 = smul.addr %s296, 16
        %s298 = scalar_lea.vmem [#allocation5], %s297
        %s299 = sld [smem:[#allocation2]]
        %s300 = sld [smem:[#allocation2 + $0x1]]
        %s301 = sld [smem:[#allocation2 + $0x2]]
        %v302 = vld [vmem:[%s272] sm:$0xff]
        %v303 = vld [vmem:[%s272 + $0x8] sm:$0xff]
        %v304 = vstv %s299
        %v305 = vsub.f32 %v302, %v304
        %v306 = vsub.f32 %v303, %v304
        %v307 = vstv %s300
        %v308 = vmul.f32 %v305, %v307
        %v309 = vmul.f32 %v306, %v307
        %v310 = vstv %s301
        %v311 = vadd.f32 %v308, %v310
        %v312 = vadd.f32 %v309, %v310
        %v313 = vld [vmem:[%s2] sm:$0xff]
        %v314 = vld [vmem:[%s2 + $0x8] sm:$0xff]
        %v315 = vld [vmem:[%s2 + $0x10] sm:$0xff]
        %v316 = vld [vmem:[%s2 + $0x18] sm:$0xff]
        %v317 = vld [vmem:[%s2 + $0x20] sm:$0xff]
        %v318 = vld [vmem:[%s2 + $0x28] sm:$0xff]
        %v319 = vld [vmem:[%s2 + $0x30] sm:$0xff]
        %v320 = vld [vmem:[%s2 + $0x38] sm:$0xff]
        %v321 = vld [vmem:[%s2 + $0x40] sm:$0xff]
        %v322 = vld [vmem:[%s2 + $0x48] sm:$0xff]
        %v323 = vld [vmem:[%s2 + $0x50] sm:$0xff]
        %v324 = vld [vmem:[%s2 + $0x58] sm:$0xff]
        %v325 = vld [vmem:[%s2 + $0x60] sm:$0xff]
        %v326 = vld [vmem:[%s2 + $0x68] sm:$0xff]
        %v327 = vld [vmem:[%s2 + $0x70] sm:$0xff]
        %v328 = vld [vmem:[%s2 + $0x78] sm:$0xff]
        %v329 = vld [vmem:[%s3] sm:$0xff]
        %v330 = vld [vmem:[%s3 + $0x8] sm:$0xff]
        %v331 = vld [vmem:[%s4] sm:$0x1]
        %v332 = vld [vmem:[%s5] sm:$0xff]
        %v333 = vld [vmem:[%s5 + $0x8] sm:$0xff]
        %vm334 = vcmask 130048
        %v336 = vsel %vm334, %v329, 0
        %v339 = vsel %vm334, %v330, 0
        %341 = vmatprep.subr.mxu0 0.0
        %342 = vmatpush1.msra.mxu0 0.0
        %343 = vmatprep.subr.mxu0 0.0
        %344 = vmatpush1.msra.mxu0 0.0
        %345 = vmatprep.subr.mxu0 0.0
        %346 = vmatpush1.msra.mxu0 0.0
        %347 = vmatprep.subr.mxu0 0.0
        %348 = vmatpush1.msra.mxu0 0.0
        %349 = vmatprep.subr.mxu0 0.0
        %350 = vmatpush1.msra.mxu0 0.0
        %351 = vmatprep.subr.mxu0 0.0
        %352 = vmatpush1.msra.mxu0 0.0
        %353 = vmatprep.subr.mxu0 0.0
        %354 = vmatpush1.msra.mxu0 0.0
        %355 = vmatprep.subr.mxu0 0.0
        %356 = vmatpush1.msra.mxu0 0.0
        %357 = vmatprep.subr.mxu0 0.0
        %358 = vmatpush1.msra.mxu0 0.0
        %359 = vmatprep.subr.mxu0 0.0
        %360 = vmatpush1.msra.mxu0 0.0
        %361 = vmatprep.subr.mxu0 0.0
        %362 = vmatpush1.msra.mxu0 0.0
        %363 = vmatprep.subr.mxu0 0.0
        %364 = vmatpush1.msra.mxu0 0.0
        %365 = vmatprep.subr.mxu0 0.0
        %366 = vmatpush1.msra.mxu0 0.0
        %367 = vmatprep.subr.mxu0 0.0
        %368 = vmatpush1.msra.mxu0 0.0
        %369 = vmatprep.subr.mxu0 0.0
        %370 = vmatpush1.msra.mxu0 %v312
        %371 = vmatprep.subr.mxu0 0.0
        %372 = vmatpush1.msra.mxu0 %v311
        %373 = vmatprep.subr.mxu0 0.0
        %374 = vmatpush2.msra.mxu0 0.0
        %375 = vmatprep.subr.mxu0 0.0
        %376 = vmatpush2.msra.mxu0 0.0
        %377 = vmatprep.subr.mxu0 0.0
        %378 = vmatpush2.msra.mxu0 0.0
        %379 = vmatprep.subr.mxu0 0.0
        %380 = vmatpush2.msra.mxu0 0.0
        %381 = vmatprep.subr.mxu0 0.0
        %382 = vmatpush2.msra.mxu0 0.0
        %383 = vmatprep.subr.mxu0 0.0
        %384 = vmatpush2.msra.mxu0 0.0
        %385 = vmatprep.subr.mxu0 0.0
        %386 = vmatpush2.msra.mxu0 0.0
        %387 = vmatprep.subr.mxu0 0.0
        %388 = vmatpush2.msra.mxu0 0.0
        %389 = vmatprep.subr.mxu0 0.0
        %390 = vmatpush2.msra.mxu0 0.0
        %391 = vmatprep.subr.mxu0 0.0
        %392 = vmatpush2.msra.mxu0 0.0
        %393 = vmatprep.subr.mxu0 0.0
        %394 = vmatpush2.msra.mxu0 0.0
        %395 = vmatprep.subr.mxu0 0.0
        %396 = vmatpush2.msra.mxu0 0.0
        %397 = vmatprep.subr.mxu0 0.0
        %398 = vmatpush2.msra.mxu0 0.0
        %399 = vmatprep.subr.mxu0 0.0
        %400 = vmatpush2.msra.mxu0 0.0
        %401 = vmatprep.subr.mxu0 0.0
        %402 = vmatpush2.msra.mxu0 0.0
        %403 = vmatprep.subr.mxu0 0.0
        %404 = vmatpush2.msra.mxu0 0.0
        %405 = vmatprep.mubr.f32.mxu0 0.0
        %406 = vmatmul.mubr.f32.gmra.mxu0 %v336
        %v407 = vpop.f32.mrf.mxu0
        %v408 = vadd.f32 0.0, %v407
        %v409 = vpop.f32.mrf.mxu0
        %410 = vmatprep.mubr.f32.mxu0 0.0
        %411 = vmatmul.mubr.f32.gmra.mxu0 %v339
        %v412 = vpop.f32.mrf.mxu0
        %v413 = vadd.f32 0.0, %v412
        %v414 = vpop.f32.mrf.mxu0
        %415 = vdwg.mxu0
        %416 = vmatprep.subr.mxu0 0.0
        %417 = vmatpush1.msra.mxu0 %v328
        %418 = vmatprep.subr.mxu0 0.0
        %419 = vmatpush1.msra.mxu0 %v327
        %420 = vmatprep.subr.mxu0 0.0
        %421 = vmatpush1.msra.mxu0 %v326
        %422 = vmatprep.subr.mxu0 0.0
        %423 = vmatpush1.msra.mxu0 %v325
        %424 = vmatprep.subr.mxu0 0.0
        %425 = vmatpush1.msra.mxu0 %v324
        %426 = vmatprep.subr.mxu0 0.0
        %427 = vmatpush1.msra.mxu0 %v323
        %428 = vmatprep.subr.mxu0 0.0
        %429 = vmatpush1.msra.mxu0 %v322
        %430 = vmatprep.subr.mxu0 0.0
        %431 = vmatpush1.msra.mxu0 %v321
        %432 = vmatprep.subr.mxu0 0.0
        %433 = vmatpush1.msra.mxu0 %v320
        %434 = vmatprep.subr.mxu0 0.0
        %435 = vmatpush1.msra.mxu0 %v319
        %436 = vmatprep.subr.mxu0 0.0
        %437 = vmatpush1.msra.mxu0 %v318
        %438 = vmatprep.subr.mxu0 0.0
        %439 = vmatpush1.msra.mxu0 %v317
        %440 = vmatprep.subr.mxu0 0.0
        %441 = vmatpush1.msra.mxu0 %v316
        %442 = vmatprep.subr.mxu0 0.0
        %443 = vmatpush1.msra.mxu0 %v315
        %444 = vmatprep.subr.mxu0 0.0
        %445 = vmatpush1.msra.mxu0 %v314
        %446 = vmatprep.subr.mxu0 0.0
        %447 = vmatpush1.msra.mxu0 %v313
        %448 = vmatprep.subr.mxu0 0.0
        %449 = vmatpush2.msra.mxu0 0.0
        %450 = vmatprep.subr.mxu0 0.0
        %451 = vmatpush2.msra.mxu0 0.0
        %452 = vmatprep.subr.mxu0 0.0
        %453 = vmatpush2.msra.mxu0 0.0
        %454 = vmatprep.subr.mxu0 0.0
        %455 = vmatpush2.msra.mxu0 0.0
        %456 = vmatprep.subr.mxu0 0.0
        %457 = vmatpush2.msra.mxu0 0.0
        %458 = vmatprep.subr.mxu0 0.0
        %459 = vmatpush2.msra.mxu0 0.0
        %460 = vmatprep.subr.mxu0 0.0
        %461 = vmatpush2.msra.mxu0 0.0
        %462 = vmatprep.subr.mxu0 0.0
        %463 = vmatpush2.msra.mxu0 0.0
        %464 = vmatprep.subr.mxu0 0.0
        %465 = vmatpush2.msra.mxu0 0.0
        %466 = vmatprep.subr.mxu0 0.0
        %467 = vmatpush2.msra.mxu0 0.0
        %468 = vmatprep.subr.mxu0 0.0
        %469 = vmatpush2.msra.mxu0 0.0
        %470 = vmatprep.subr.mxu0 0.0
        %471 = vmatpush2.msra.mxu0 0.0
        %472 = vmatprep.subr.mxu0 0.0
        %473 = vmatpush2.msra.mxu0 0.0
        %474 = vmatprep.subr.mxu0 0.0
        %475 = vmatpush2.msra.mxu0 0.0
        %476 = vmatprep.subr.mxu0 0.0
        %477 = vmatpush2.msra.mxu0 0.0
        %478 = vmatprep.subr.mxu0 0.0
        %479 = vmatpush2.msra.mxu0 0.0
        %480 = vmatprep.mubr.f32.mxu0 0.0
        %481 = vmatmul.mubr.f32.gmra.mxu0 %v311
        %v482 = vpop.f32.mrf.mxu0
        %v483 = vadd.f32 %v408, %v482
        %v484 = vpop.f32.mrf.mxu0
        %485 = vmatprep.mubr.f32.mxu0 0.0
        %486 = vmatmul.mubr.f32.gmra.mxu0 %v312
        %v487 = vpop.f32.mrf.mxu0
        %v488 = vadd.f32 %v413, %v487
        %v489 = vpop.f32.mrf.mxu0
        %490 = vdwg.mxu0
        %v492 = vlaneseq
        %v493 = vshrl.u32 %v492, 7
        %v494 = vsub.s32 0, %v493
        %v495 = vrot.slane %v331, %v494
        %v497 = vadd.f32 %v483, %v495
        %v498 = vadd.f32 %v488, %v495
        %500 = vset.pattern.permute.xlu0 0
        %501 = vperm.xlu0 %500, %v332
        %v502 = vpop.permute.xlu0 %501
        %505 = vset.pattern.permute.xlu0 0
        %506 = vperm.xlu0 %505, %v333
        %v507 = vpop.permute.xlu0 %506
        %v509 = vadd.f32 %v497, %v502
        %v510 = vadd.f32 %v498, %v507
        %v511 = vadd.f32 %v509, %v311
        %v512 = vadd.f32 %v510, %v312
        %v513 = vmul.f32 %v511, 0.01
        %v514 = vmul.f32 %v512, 0.01
        %v515 = vmax.f32 %v511, %v513
        %v516 = vmax.f32 %v512, %v514
        %s517 = scalar_lea.vmem %s2, 128
        %v518 = vld [vmem:[%s517] sm:$0xff]
        %v519 = vld [vmem:[%s517 + $0x8] sm:$0xff]
        %v520 = vld [vmem:[%s517 + $0x10] sm:$0xff]
        %v521 = vld [vmem:[%s517 + $0x18] sm:$0xff]
        %v522 = vld [vmem:[%s517 + $0x20] sm:$0xff]
        %v523 = vld [vmem:[%s517 + $0x28] sm:$0xff]
        %v524 = vld [vmem:[%s517 + $0x30] sm:$0xff]
        %v525 = vld [vmem:[%s517 + $0x38] sm:$0xff]
        %v526 = vld [vmem:[%s517 + $0x40] sm:$0xff]
        %v527 = vld [vmem:[%s517 + $0x48] sm:$0xff]
        %v528 = vld [vmem:[%s517 + $0x50] sm:$0xff]
        %v529 = vld [vmem:[%s517 + $0x58] sm:$0xff]
        %v530 = vld [vmem:[%s517 + $0x60] sm:$0xff]
        %v531 = vld [vmem:[%s517 + $0x68] sm:$0xff]
        %v532 = vld [vmem:[%s517 + $0x70] sm:$0xff]
        %v533 = vld [vmem:[%s517 + $0x78] sm:$0xff]
        %s534 = scalar_lea.vmem %s3, 16
        %v535 = vld [vmem:[%s534] sm:$0xff]
        %v536 = vld [vmem:[%s534 + $0x8] sm:$0xff]
        %s537 = scalar_lea.vmem %s4, 1
        %v538 = vld [vmem:[%s537] sm:$0x1]
        %s539 = scalar_lea.vmem %s5, 16
        %v540 = vld [vmem:[%s539] sm:$0xff]
        %v541 = vld [vmem:[%s539 + $0x8] sm:$0xff]
        %v543 = vsel %vm334, %v535, 0
        %v546 = vsel %vm334, %v536, 0
        %548 = vmatprep.subr.mxu0 0.0
        %549 = vmatpush1.msra.mxu0 0.0
        %550 = vmatprep.subr.mxu0 0.0
        %551 = vmatpush1.msra.mxu0 0.0
        %552 = vmatprep.subr.mxu0 0.0
        %553 = vmatpush1.msra.mxu0 0.0
        %554 = vmatprep.subr.mxu0 0.0
        %555 = vmatpush1.msra.mxu0 0.0
        %556 = vmatprep.subr.mxu0 0.0
        %557 = vmatpush1.msra.mxu0 0.0
        %558 = vmatprep.subr.mxu0 0.0
        %559 = vmatpush1.msra.mxu0 0.0
        %560 = vmatprep.subr.mxu0 0.0
        %561 = vmatpush1.msra.mxu0 0.0
        %562 = vmatprep.subr.mxu0 0.0
        %563 = vmatpush1.msra.mxu0 0.0
        %564 = vmatprep.subr.mxu0 0.0
        %565 = vmatpush1.msra.mxu0 0.0
        %566 = vmatprep.subr.mxu0 0.0
        %567 = vmatpush1.msra.mxu0 0.0
        %568 = vmatprep.subr.mxu0 0.0
        %569 = vmatpush1.msra.mxu0 0.0
        %570 = vmatprep.subr.mxu0 0.0
        %571 = vmatpush1.msra.mxu0 0.0
        %572 = vmatprep.subr.mxu0 0.0
        %573 = vmatpush1.msra.mxu0 0.0
        %574 = vmatprep.subr.mxu0 0.0
        %575 = vmatpush1.msra.mxu0 0.0
        %576 = vmatprep.subr.mxu0 0.0
        %577 = vmatpush1.msra.mxu0 %v516
        %578 = vmatprep.subr.mxu0 0.0
        %579 = vmatpush1.msra.mxu0 %v515
        %580 = vmatprep.subr.mxu0 0.0
        %581 = vmatpush2.msra.mxu0 0.0
        %582 = vmatprep.subr.mxu0 0.0
        %583 = vmatpush2.msra.mxu0 0.0
        %584 = vmatprep.subr.mxu0 0.0
        %585 = vmatpush2.msra.mxu0 0.0
        %586 = vmatprep.subr.mxu0 0.0
        %587 = vmatpush2.msra.mxu0 0.0
        %588 = vmatprep.subr.mxu0 0.0
        %589 = vmatpush2.msra.mxu0 0.0
        %590 = vmatprep.subr.mxu0 0.0
        %591 = vmatpush2.msra.mxu0 0.0
        %592 = vmatprep.subr.mxu0 0.0
        %593 = vmatpush2.msra.mxu0 0.0
        %594 = vmatprep.subr.mxu0 0.0
        %595 = vmatpush2.msra.mxu0 0.0
        %596 = vmatprep.subr.mxu0 0.0
        %597 = vmatpush2.msra.mxu0 0.0
        %598 = vmatprep.subr.mxu0 0.0
        %599 = vmatpush2.msra.mxu0 0.0
        %600 = vmatprep.subr.mxu0 0.0
        %601 = vmatpush2.msra.mxu0 0.0
        %602 = vmatprep.subr.mxu0 0.0
        %603 = vmatpush2.msra.mxu0 0.0
        %604 = vmatprep.subr.mxu0 0.0
        %605 = vmatpush2.msra.mxu0 0.0
        %606 = vmatprep.subr.mxu0 0.0
        %607 = vmatpush2.msra.mxu0 0.0
        %608 = vmatprep.subr.mxu0 0.0
        %609 = vmatpush2.msra.mxu0 0.0
        %610 = vmatprep.subr.mxu0 0.0
        %611 = vmatpush2.msra.mxu0 0.0
        %612 = vmatprep.mubr.f32.mxu0 0.0
        %613 = vmatmul.mubr.f32.gmra.mxu0 %v543
        %v614 = vpop.f32.mrf.mxu0
        %v615 = vadd.f32 0.0, %v614
        %v616 = vpop.f32.mrf.mxu0
        %617 = vmatprep.mubr.f32.mxu0 0.0
        %618 = vmatmul.mubr.f32.gmra.mxu0 %v546
        %v619 = vpop.f32.mrf.mxu0
        %v620 = vadd.f32 0.0, %v619
        %v621 = vpop.f32.mrf.mxu0
        %622 = vdwg.mxu0
        %623 = vmatprep.subr.mxu0 0.0
        %624 = vmatpush1.msra.mxu0 %v533
        %625 = vmatprep.subr.mxu0 0.0
        %626 = vmatpush1.msra.mxu0 %v532
        %627 = vmatprep.subr.mxu0 0.0
        %628 = vmatpush1.msra.mxu0 %v531
        %629 = vmatprep.subr.mxu0 0.0
        %630 = vmatpush1.msra.mxu0 %v530
        %631 = vmatprep.subr.mxu0 0.0
        %632 = vmatpush1.msra.mxu0 %v529
        %633 = vmatprep.subr.mxu0 0.0
        %634 = vmatpush1.msra.mxu0 %v528
        %635 = vmatprep.subr.mxu0 0.0
        %636 = vmatpush1.msra.mxu0 %v527
        %637 = vmatprep.subr.mxu0 0.0
        %638 = vmatpush1.msra.mxu0 %v526
        %639 = vmatprep.subr.mxu0 0.0
        %640 = vmatpush1.msra.mxu0 %v525
        %641 = vmatprep.subr.mxu0 0.0
        %642 = vmatpush1.msra.mxu0 %v524
        %643 = vmatprep.subr.mxu0 0.0
        %644 = vmatpush1.msra.mxu0 %v523
        %645 = vmatprep.subr.mxu0 0.0
        %646 = vmatpush1.msra.mxu0 %v522
        %647 = vmatprep.subr.mxu0 0.0
        %648 = vmatpush1.msra.mxu0 %v521
        %649 = vmatprep.subr.mxu0 0.0
        %650 = vmatpush1.msra.mxu0 %v520
        %651 = vmatprep.subr.mxu0 0.0
        %652 = vmatpush1.msra.mxu0 %v519
        %653 = vmatprep.subr.mxu0 0.0
        %654 = vmatpush1.msra.mxu0 %v518
        %655 = vmatprep.subr.mxu0 0.0
        %656 = vmatpush2.msra.mxu0 0.0
        %657 = vmatprep.subr.mxu0 0.0
        %658 = vmatpush2.msra.mxu0 0.0
        %659 = vmatprep.subr.mxu0 0.0
        %660 = vmatpush2.msra.mxu0 0.0
        %661 = vmatprep.subr.mxu0 0.0
        %662 = vmatpush2.msra.mxu0 0.0
        %663 = vmatprep.subr.mxu0 0.0
        %664 = vmatpush2.msra.mxu0 0.0
        %665 = vmatprep.subr.mxu0 0.0
        %666 = vmatpush2.msra.mxu0 0.0
        %667 = vmatprep.subr.mxu0 0.0
        %668 = vmatpush2.msra.mxu0 0.0
        %669 = vmatprep.subr.mxu0 0.0
        %670 = vmatpush2.msra.mxu0 0.0
        %671 = vmatprep.subr.mxu0 0.0
        %672 = vmatpush2.msra.mxu0 0.0
        %673 = vmatprep.subr.mxu0 0.0
        %674 = vmatpush2.msra.mxu0 0.0
        %675 = vmatprep.subr.mxu0 0.0
        %676 = vmatpush2.msra.mxu0 0.0
        %677 = vmatprep.subr.mxu0 0.0
        %678 = vmatpush2.msra.mxu0 0.0
        %679 = vmatprep.subr.mxu0 0.0
        %680 = vmatpush2.msra.mxu0 0.0
        %681 = vmatprep.subr.mxu0 0.0
        %682 = vmatpush2.msra.mxu0 0.0
        %683 = vmatprep.subr.mxu0 0.0
        %684 = vmatpush2.msra.mxu0 0.0
        %685 = vmatprep.subr.mxu0 0.0
        %686 = vmatpush2.msra.mxu0 0.0
        %687 = vmatprep.mubr.f32.mxu0 0.0
        %688 = vmatmul.mubr.f32.gmra.mxu0 %v515
        %v689 = vpop.f32.mrf.mxu0
        %v690 = vadd.f32 %v615, %v689
        %v691 = vpop.f32.mrf.mxu0
        %692 = vmatprep.mubr.f32.mxu0 0.0
        %693 = vmatmul.mubr.f32.gmra.mxu0 %v516
        %v694 = vpop.f32.mrf.mxu0
        %v695 = vadd.f32 %v620, %v694
        %v696 = vpop.f32.mrf.mxu0
        %697 = vdwg.mxu0
        %v699 = vlaneseq
        %v700 = vshrl.u32 %v699, 7
        %v701 = vsub.s32 0, %v700
        %v702 = vrot.slane %v538, %v701
        %v704 = vadd.f32 %v690, %v702
        %v705 = vadd.f32 %v695, %v702
        %707 = vset.pattern.permute.xlu0 0
        %708 = vperm.xlu0 %707, %v540
        %v709 = vpop.permute.xlu0 %708
        %712 = vset.pattern.permute.xlu0 0
        %713 = vperm.xlu0 %712, %v541
        %v714 = vpop.permute.xlu0 %713
        %v716 = vadd.f32 %v704, %v709
        %v717 = vadd.f32 %v705, %v714
        %v718 = vadd.f32 %v716, %v515
        %v719 = vadd.f32 %v717, %v516
        %v720 = vmul.f32 %v718, 0.01
        %v721 = vmul.f32 %v719, 0.01
        %v722 = vmax.f32 %v718, %v720
        %v723 = vmax.f32 %v719, %v721
        %s724 = scalar_lea.vmem %s2, 256
        %v725 = vld [vmem:[%s724] sm:$0xff]
        %v726 = vld [vmem:[%s724 + $0x8] sm:$0xff]
        %v727 = vld [vmem:[%s724 + $0x10] sm:$0xff]
        %v728 = vld [vmem:[%s724 + $0x18] sm:$0xff]
        %v729 = vld [vmem:[%s724 + $0x20] sm:$0xff]
        %v730 = vld [vmem:[%s724 + $0x28] sm:$0xff]
        %v731 = vld [vmem:[%s724 + $0x30] sm:$0xff]
        %v732 = vld [vmem:[%s724 + $0x38] sm:$0xff]
        %v733 = vld [vmem:[%s724 + $0x40] sm:$0xff]
        %v734 = vld [vmem:[%s724 + $0x48] sm:$0xff]
        %v735 = vld [vmem:[%s724 + $0x50] sm:$0xff]
        %v736 = vld [vmem:[%s724 + $0x58] sm:$0xff]
        %v737 = vld [vmem:[%s724 + $0x60] sm:$0xff]
        %v738 = vld [vmem:[%s724 + $0x68] sm:$0xff]
        %v739 = vld [vmem:[%s724 + $0x70] sm:$0xff]
        %v740 = vld [vmem:[%s724 + $0x78] sm:$0xff]
        %s741 = scalar_lea.vmem %s3, 32
        %v742 = vld [vmem:[%s741] sm:$0xff]
        %v743 = vld [vmem:[%s741 + $0x8] sm:$0xff]
        %s744 = scalar_lea.vmem %s4, 2
        %v745 = vld [vmem:[%s744] sm:$0x1]
        %s746 = scalar_lea.vmem %s5, 32
        %v747 = vld [vmem:[%s746] sm:$0xff]
        %v748 = vld [vmem:[%s746 + $0x8] sm:$0xff]
        %v750 = vsel %vm334, %v742, 0
        %v753 = vsel %vm334, %v743, 0
        %755 = vmatprep.subr.mxu0 0.0
        %756 = vmatpush1.msra.mxu0 0.0
        %757 = vmatprep.subr.mxu0 0.0
        %758 = vmatpush1.msra.mxu0 0.0
        %759 = vmatprep.subr.mxu0 0.0
        %760 = vmatpush1.msra.mxu0 0.0
        %761 = vmatprep.subr.mxu0 0.0
        %762 = vmatpush1.msra.mxu0 0.0
        %763 = vmatprep.subr.mxu0 0.0
        %764 = vmatpush1.msra.mxu0 0.0
        %765 = vmatprep.subr.mxu0 0.0
        %766 = vmatpush1.msra.mxu0 0.0
        %767 = vmatprep.subr.mxu0 0.0
        %768 = vmatpush1.msra.mxu0 0.0
        %769 = vmatprep.subr.mxu0 0.0
        %770 = vmatpush1.msra.mxu0 0.0
        %771 = vmatprep.subr.mxu0 0.0
        %772 = vmatpush1.msra.mxu0 0.0
        %773 = vmatprep.subr.mxu0 0.0
        %774 = vmatpush1.msra.mxu0 0.0
        %775 = vmatprep.subr.mxu0 0.0
        %776 = vmatpush1.msra.mxu0 0.0
        %777 = vmatprep.subr.mxu0 0.0
        %778 = vmatpush1.msra.mxu0 0.0
        %779 = vmatprep.subr.mxu0 0.0
        %780 = vmatpush1.msra.mxu0 0.0
        %781 = vmatprep.subr.mxu0 0.0
        %782 = vmatpush1.msra.mxu0 0.0
        %783 = vmatprep.subr.mxu0 0.0
        %784 = vmatpush1.msra.mxu0 %v723
        %785 = vmatprep.subr.mxu0 0.0
        %786 = vmatpush1.msra.mxu0 %v722
        %787 = vmatprep.subr.mxu0 0.0
        %788 = vmatpush2.msra.mxu0 0.0
        %789 = vmatprep.subr.mxu0 0.0
        %790 = vmatpush2.msra.mxu0 0.0
        %791 = vmatprep.subr.mxu0 0.0
        %792 = vmatpush2.msra.mxu0 0.0
        %793 = vmatprep.subr.mxu0 0.0
        %794 = vmatpush2.msra.mxu0 0.0
        %795 = vmatprep.subr.mxu0 0.0
        %796 = vmatpush2.msra.mxu0 0.0
        %797 = vmatprep.subr.mxu0 0.0
        %798 = vmatpush2.msra.mxu0 0.0
        %799 = vmatprep.subr.mxu0 0.0
        %800 = vmatpush2.msra.mxu0 0.0
        %801 = vmatprep.subr.mxu0 0.0
        %802 = vmatpush2.msra.mxu0 0.0
        %803 = vmatprep.subr.mxu0 0.0
        %804 = vmatpush2.msra.mxu0 0.0
        %805 = vmatprep.subr.mxu0 0.0
        %806 = vmatpush2.msra.mxu0 0.0
        %807 = vmatprep.subr.mxu0 0.0
        %808 = vmatpush2.msra.mxu0 0.0
        %809 = vmatprep.subr.mxu0 0.0
        %810 = vmatpush2.msra.mxu0 0.0
        %811 = vmatprep.subr.mxu0 0.0
        %812 = vmatpush2.msra.mxu0 0.0
        %813 = vmatprep.subr.mxu0 0.0
        %814 = vmatpush2.msra.mxu0 0.0
        %815 = vmatprep.subr.mxu0 0.0
        %816 = vmatpush2.msra.mxu0 0.0
        %817 = vmatprep.subr.mxu0 0.0
        %818 = vmatpush2.msra.mxu0 0.0
        %819 = vmatprep.mubr.f32.mxu0 0.0
        %820 = vmatmul.mubr.f32.gmra.mxu0 %v750
        %v821 = vpop.f32.mrf.mxu0
        %v822 = vadd.f32 0.0, %v821
        %v823 = vpop.f32.mrf.mxu0
        %824 = vmatprep.mubr.f32.mxu0 0.0
        %825 = vmatmul.mubr.f32.gmra.mxu0 %v753
        %v826 = vpop.f32.mrf.mxu0
        %v827 = vadd.f32 0.0, %v826
        %v828 = vpop.f32.mrf.mxu0
        %829 = vdwg.mxu0
        %830 = vmatprep.subr.mxu0 0.0
        %831 = vmatpush1.msra.mxu0 %v740
        %832 = vmatprep.subr.mxu0 0.0
        %833 = vmatpush1.msra.mxu0 %v739
        %834 = vmatprep.subr.mxu0 0.0
        %835 = vmatpush1.msra.mxu0 %v738
        %836 = vmatprep.subr.mxu0 0.0
        %837 = vmatpush1.msra.mxu0 %v737
        %838 = vmatprep.subr.mxu0 0.0
        %839 = vmatpush1.msra.mxu0 %v736
        %840 = vmatprep.subr.mxu0 0.0
        %841 = vmatpush1.msra.mxu0 %v735
        %842 = vmatprep.subr.mxu0 0.0
        %843 = vmatpush1.msra.mxu0 %v734
        %844 = vmatprep.subr.mxu0 0.0
        %845 = vmatpush1.msra.mxu0 %v733
        %846 = vmatprep.subr.mxu0 0.0
        %847 = vmatpush1.msra.mxu0 %v732
        %848 = vmatprep.subr.mxu0 0.0
        %849 = vmatpush1.msra.mxu0 %v731
        %850 = vmatprep.subr.mxu0 0.0
        %851 = vmatpush1.msra.mxu0 %v730
        %852 = vmatprep.subr.mxu0 0.0
        %853 = vmatpush1.msra.mxu0 %v729
        %854 = vmatprep.subr.mxu0 0.0
        %855 = vmatpush1.msra.mxu0 %v728
        %856 = vmatprep.subr.mxu0 0.0
        %857 = vmatpush1.msra.mxu0 %v727
        %858 = vmatprep.subr.mxu0 0.0
        %859 = vmatpush1.msra.mxu0 %v726
        %860 = vmatprep.subr.mxu0 0.0
        %861 = vmatpush1.msra.mxu0 %v725
        %862 = vmatprep.subr.mxu0 0.0
        %863 = vmatpush2.msra.mxu0 0.0
        %864 = vmatprep.subr.mxu0 0.0
        %865 = vmatpush2.msra.mxu0 0.0
        %866 = vmatprep.subr.mxu0 0.0
        %867 = vmatpush2.msra.mxu0 0.0
        %868 = vmatprep.subr.mxu0 0.0
        %869 = vmatpush2.msra.mxu0 0.0
        %870 = vmatprep.subr.mxu0 0.0
        %871 = vmatpush2.msra.mxu0 0.0
        %872 = vmatprep.subr.mxu0 0.0
        %873 = vmatpush2.msra.mxu0 0.0
        %874 = vmatprep.subr.mxu0 0.0
        %875 = vmatpush2.msra.mxu0 0.0
        %876 = vmatprep.subr.mxu0 0.0
        %877 = vmatpush2.msra.mxu0 0.0
        %878 = vmatprep.subr.mxu0 0.0
        %879 = vmatpush2.msra.mxu0 0.0
        %880 = vmatprep.subr.mxu0 0.0
        %881 = vmatpush2.msra.mxu0 0.0
        %882 = vmatprep.subr.mxu0 0.0
        %883 = vmatpush2.msra.mxu0 0.0
        %884 = vmatprep.subr.mxu0 0.0
        %885 = vmatpush2.msra.mxu0 0.0
        %886 = vmatprep.subr.mxu0 0.0
        %887 = vmatpush2.msra.mxu0 0.0
        %888 = vmatprep.subr.mxu0 0.0
        %889 = vmatpush2.msra.mxu0 0.0
        %890 = vmatprep.subr.mxu0 0.0
        %891 = vmatpush2.msra.mxu0 0.0
        %892 = vmatprep.subr.mxu0 0.0
        %893 = vmatpush2.msra.mxu0 0.0
        %894 = vmatprep.mubr.f32.mxu0 0.0
        %895 = vmatmul.mubr.f32.gmra.mxu0 %v722
        %v896 = vpop.f32.mrf.mxu0
        %v897 = vadd.f32 %v822, %v896
        %v898 = vpop.f32.mrf.mxu0
        %899 = vmatprep.mubr.f32.mxu0 0.0
        %900 = vmatmul.mubr.f32.gmra.mxu0 %v723
        %v901 = vpop.f32.mrf.mxu0
        %v902 = vadd.f32 %v827, %v901
        %v903 = vpop.f32.mrf.mxu0
        %904 = vdwg.mxu0
        %v906 = vlaneseq
        %v907 = vshrl.u32 %v906, 7
        %v908 = vsub.s32 0, %v907
        %v909 = vrot.slane %v745, %v908
        %v911 = vadd.f32 %v897, %v909
        %v912 = vadd.f32 %v902, %v909
        %914 = vset.pattern.permute.xlu0 0
        %915 = vperm.xlu0 %914, %v747
        %v916 = vpop.permute.xlu0 %915
        %919 = vset.pattern.permute.xlu0 0
        %920 = vperm.xlu0 %919, %v748
        %v921 = vpop.permute.xlu0 %920
        %v923 = vadd.f32 %v911, %v916
        %v924 = vadd.f32 %v912, %v921
        %v925 = vadd.f32 %v923, %v722
        %v926 = vadd.f32 %v924, %v723
        %v927 = vmul.f32 %v925, 0.01
        %v928 = vmul.f32 %v926, 0.01
        %v929 = vmax.f32 %v925, %v927
        %v930 = vmax.f32 %v926, %v928
        %931 = vst [vmem:[%s298] sm:$0xff] %v929
        %932 = vst [vmem:[%s298 + $0x8] sm:$0xff] %v930
        %s933 = sand.u32 %s157, 1
        %s934 = sand.u32 %s157, 1
        %s935 = smul.addr %s934, 16
        %s936 = scalar_lea.vmem [#allocation5], %s935
        // Predicated region
        $region87: #{generative_forward.1} parent=77 // pred_check
          %p937 = pneg %p167
        $region88: #{generative_forward.1} parent=77 // pred_check_branch
          %939 = sbr.rel (%p937) target = $region90
        $region89: #{generative_forward.1} parent=77 // pred_region
          %s940 = smul.addr %s18, 8
          %s941 = scalar_lea.vmem %s6, %s940
          // Predicated region
          $region91: #{generative_forward.1} parent=89 // pred_check
            _
          $region92: #{generative_forward.1} parent=89 // pred_check_branch
            %943 = sbr.rel (0) target = $region94
          $region93: #{generative_forward.1} parent=89 // pred_region
            // Predicated region
            $region95: #{generative_forward.1} parent=93 // pred_check
              _
            $region96: #{generative_forward.1} parent=93 // pred_check_branch
              %945 = sbr.rel (0) target = $region98
            $region97: #{generative_forward.1} parent=93 // pred_region
              // Predicated region
              $region110: #{generative_forward.1} parent=97 // pred_check
                _
              $region111: #{generative_forward.1} parent=97 // pred_check_branch
                %963 = sbr.rel (0) target = $region113
              $region112: #{generative_forward.1} parent=97 // pred_region
                loop: start=0, step=1, limit=1
                $region114: #{generative_forward.1} parent=112 // loop_pre_header
                  _
                $region115: #{generative_forward.1} parent=112 // loop_header
                  %s965 = sphi 0, %s969
                  %p966 = scmp.ge.s32.totalorder %s965, 1
                  %s970 = sphi %s936, %s936
                  %s971 = sphi %s941, %s941
                $region116: #{generative_forward.1} parent=112 // loop_header_branch
                  %968 = sbr.rel (%p966) target = $region120
                $region117: #{generative_forward.1} parent=112 // loop_body
                  %v972 = vld [vmem:[%s970] sm:$0xff]
                  %973 = vst [vmem:[%s971] sm:$0xff] %v972
                  %v974 = vld [vmem:[%s970 + $0x8] sm:$0xff]
                  %975 = vst [vmem:[%s971 + $0x10] sm:$0xff] %v974
                $region118: #{generative_forward.1} parent=112 // loop_footer
                  %s969 = sadd.s32 1, %s965
                $region119: #{generative_forward.1} parent=112 // loop_footer_branch
                  %964 = sbr.rel target = $region115
                $region120: #{generative_forward.1} parent=112 // loop_exit
                  _
              $region113: #{generative_forward.1} parent=97 // pred_fallthru
                _
              // Predicated region
              $region121: #{generative_forward.1} parent=97 // pred_check
                _
              $region122: #{generative_forward.1} parent=97 // pred_check_branch
                %977 = sbr.rel target = $region124
              $region123: #{generative_forward.1} parent=97 // pred_region
                _
              $region124: #{generative_forward.1} parent=97 // pred_fallthru
                _
            $region98: #{generative_forward.1} parent=93 // pred_fallthru
              _
            // Predicated region
            $region99: #{generative_forward.1} parent=93 // pred_check
              _
            $region100: #{generative_forward.1} parent=93 // pred_check_branch
              %947 = sbr.rel target = $region102
            $region101: #{generative_forward.1} parent=93 // pred_region
              %s949 = ssub.s32 256, 1
              loop: start=0, step=1, limit=1
              $region103: #{generative_forward.1} parent=101 // loop_pre_header
                _
              $region104: #{generative_forward.1} parent=101 // loop_header
                %s951 = sphi 0, %s955
                %p952 = scmp.ge.s32.totalorder %s951, 1
                %s956 = sphi %s936, %s936
                %s957 = sphi %s941, %s941
              $region105: #{generative_forward.1} parent=101 // loop_header_branch
                %954 = sbr.rel (%p952) target = $region109
              $region106: #{generative_forward.1} parent=101 // loop_body
                %v958 = vld [vmem:[%s956] sm:%s949]
                %959 = vst [vmem:[%s957] sm:%s949] %v958
                %v960 = vld [vmem:[%s956 + $0x8] sm:%s949]
                %961 = vst [vmem:[%s957 + $0x10] sm:%s949] %v960
              $region107: #{generative_forward.1} parent=101 // loop_footer
                %s955 = sadd.s32 1, %s951
              $region108: #{generative_forward.1} parent=101 // loop_footer_branch
                %950 = sbr.rel target = $region104
              $region109: #{generative_forward.1} parent=101 // loop_exit
                _
            $region102: #{generative_forward.1} parent=93 // pred_fallthru
              _
          $region94: #{generative_forward.1} parent=89 // pred_fallthru
            _
          %978 = vnop
        $region90: #{generative_forward.1} parent=77 // pred_fallthru
          _
      $region78: #{generative_forward.1} parent=5 // pred_fallthru
        _
      %p979 = scmp.le.s32.totalorder 2, %s13
      // Predicated region
      $region125: #{generative_forward.1} parent=5 // pred_check
        %p980 = pneg %p979
      $region126: #{generative_forward.1} parent=5 // pred_check_branch
        %982 = sbr.rel (%p980) target = $region128
      $region127: #{generative_forward.1} parent=5 // pred_region
        %s983 = ssub.s32 %s13, 2
        // Predicated region
        $region129: #{generative_forward.1} parent=127 // pred_check
          %p984 = pneg %p173
        $region130: #{generative_forward.1} parent=127 // pred_check_branch
          %986 = sbr.rel (%p984) target = $region132
        $region131: #{generative_forward.1} parent=127 // pred_region
          %s987 = sand.u32 %s158, 1
          %s988 = sand.u32 %s158, 1
          %s989 = smul.addr %s988, 16
          %s990 = scalar_lea.vmem [#allocation5], %s989
        $region132: #{generative_forward.1} parent=127 // pred_fallthru
          _
      $region128: #{generative_forward.1} parent=5 // pred_fallthru
        _
    $region6: #{generative_forward.1} parent=1 // loop_footer
      %s17 = sadd.s32 1, %s13
    $region7: #{generative_forward.1} parent=1 // loop_footer_branch
      %12 = sbr.rel target = $region3
    $region8: #{generative_forward.1} parent=1 // loop_exit
      _
    %991 = vsyncpa [#allocation3], 1
    %s992 = scalar_lea.sflag [#allocation3], 1
    %993 = vsyncpa %s992, 1

</llo_original>
